<compile_context>
chip_gen: v5e
topology: v5e:2x2
jax: 0.10.0
libtpu: 0.0.40
codegen_flags: <defaults>
</compile_context>

<pallas_src>
import jax
import jax.numpy as jnp
from jax.experimental import pallas as pl
from jax.experimental.pallas import tpu as pltpu


def _round_up(x: int, m: int) -> int:
    return (x + m - 1) // m * m


def _cdiv(a: int, b: int) -> int:
    return (a + b - 1) // b


def decoder_kernel(z_ref, w3_ref, b3_ref, w4_ref, b4_ref, o_ref):
    # fc3: bf16 MXU matmul with f32 accumulation; bias + ReLU in f32 (VPU).
    h = jnp.dot(z_ref[...], w3_ref[...], preferred_element_type=jnp.float32)
    h = jnp.maximum(h + b3_ref[...], 0.0)            # b3 is (1, D_hid_p) -> broadcast
    # fc4 on this output-column tile; bias add + sigmoid in f32 (no bf16
    # VPU/EUP dependence -> v5e-safe); cast only at the final store.
    out = jnp.dot(h.astype(jnp.bfloat16), w4_ref[...],
                  preferred_element_type=jnp.float32)
    o_ref[...] = jax.nn.sigmoid(out + b4_ref[...]).astype(o_ref.dtype)


def prepare_decoder_params(w3, b3, w4, b4, *, num_out_tiles=1):
    """Pad + bf16-cast the weights ONCE (hoisted out of the per-call path).

    w3: (40, 400), b3: (400,), w4: (400, 784), b4: (784,) in [in, out] layout
    (i.e. PyTorch nn.Linear weights transposed).

    num_out_tiles > 1 splits fc4 + sigmoid over output-column tiles — use 2 on
    v7x when the batch is small enough that the batch grid collapses to one
    step, so both TensorCores get work.  Leave at 1 on v5e/v6e.
    """
    D_in, D_hid = w3.shape
    D_out = w4.shape[1]
    assert b3.shape == (D_hid,) and w4.shape[0] == D_hid and b4.shape == (D_out,)

    D_in_p = _round_up(D_in, 128)          # 40  -> 128 (lane-dense K)
    D_hid_p = _round_up(D_hid, 128)        # 400 -> 512
    if num_out_tiles == 1:
        # Output block == full array dim (784): allowed by the (8,128) rule;
        # avoids padded sigmoid/writeback and the wrapper column slice.
        D_out_p = D_out
    else:
        D_out_p = _round_up(D_out, 128 * num_out_tiles)

    w3_p = jnp.pad(w3, ((0, D_in_p - D_in), (0, D_hid_p - D_hid))).astype(jnp.bfloat16)
    w4_p = jnp.pad(w4, ((0, D_hid_p - D_hid), (0, D_out_p - D_out))).astype(jnp.bfloat16)
    b3_p = jnp.pad(b3, (0, D_hid_p - D_hid)).astype(jnp.float32).reshape(1, D_hid_p)
    b4_p = jnp.pad(b4, (0, D_out_p - D_out)).astype(jnp.float32).reshape(1, D_out_p)

    meta = dict(D_in=D_in, D_hid=D_hid, D_out=D_out,
                D_in_p=D_in_p, D_hid_p=D_hid_p, D_out_p=D_out_p,
                num_out_tiles=num_out_tiles)
    return (w3_p, b3_p, w4_p, b4_p), meta


def decoder_forward(z, params, meta, *, tm=512, out_dtype=None):
    """z: (B, 40).  params/meta come from prepare_decoder_params (call once)."""
    w3_p, b3_p, w4_p, b4_p = params
    B, D_in = z.shape
    assert D_in == meta["D_in"]
    D_in_p, D_hid_p, D_out_p = meta["D_in_p"], meta["D_hid_p"], meta["D_out_p"]
    D_out = meta["D_out"]
    nn = meta["num_out_tiles"]
    tn = D_out_p // nn

    # f32 output by default (matches the PyTorch module); pass
    # out_dtype=jnp.bfloat16 to halve output writeback if downstream permits.
    out_dtype = z.dtype if out_dtype is None else out_dtype

    # Balanced batch tiling: never pad B up to a full `tm`; tiles are rounded
    # to 16 rows (bf16 min sublane tile is (16, 128)).
    nb = max(1, _cdiv(B, tm))
    tm_eff = _round_up(_cdiv(B, nb), 16)
    B_p = _round_up(B, tm_eff)
    nb = B_p // tm_eff

    z_p = jnp.pad(z, ((0, B_p - B), (0, D_in_p - D_in))).astype(jnp.bfloat16)

    cost = pl.CostEstimate(
        flops=2 * B_p * (nn * D_in_p * D_hid_p + D_hid_p * D_out_p),
        transcendentals=2 * B_p * D_out_p,            # sigmoid = exp + reciprocal
        bytes_accessed=(z_p.size * 2 + w3_p.size * 2 + w4_p.size * 2
                        + b3_p.size * 4 + b4_p.size * 4
                        + B_p * D_out_p * jnp.dtype(out_dtype).itemsize),
    )

    out_p = pl.pallas_call(
        decoder_kernel,
        out_shape=jax.ShapeDtypeStruct((B_p, D_out_p), out_dtype),
        grid_spec=pl.GridSpec(
            grid=(nb, nn),
            in_specs=[
                pl.BlockSpec((tm_eff, D_in_p), lambda i, j: (i, 0)),     # z batch tile
                pl.BlockSpec((D_in_p, D_hid_p), lambda i, j: (0, 0)),    # w3 resident
                pl.BlockSpec((1, D_hid_p), lambda i, j: (0, 0)),         # b3 resident
                pl.BlockSpec((D_hid_p, tn), lambda i, j: (0, j)),        # w4 col tile
                pl.BlockSpec((1, tn), lambda i, j: (0, j)),              # b4 col tile
            ],
            out_specs=pl.BlockSpec((tm_eff, tn), lambda i, j: (i, j)),
        ),
        compiler_params=pltpu.CompilerParams(
            dimension_semantics=("parallel", "parallel"),   # megacore split (v7x)
            vmem_limit_bytes=32 << 20,                      # footprint ~5 MiB @ tm=512
        ),
        cost_estimate=cost,
    )(z_p, w3_p, b3_p, w4_p, b4_p)

    if B_p != B or D_out_p != D_out:
        out_p = out_p[:B, :D_out]
    return out_p


def decoder_reference(z, w3, b3, w4, b4):
    h = jnp.maximum(z @ w3 + b3, 0.0)
    return jax.nn.sigmoid(h @ w4 + b4)


if __name__ == "__main__":
    key = jax.random.PRNGKey(0)
    k_z, k_w3, k_b3, k_w4, k_b4 = jax.random.split(key, 5)

    B, D_in, D_hid, D_out = 8, 40, 400, 784

    # Deterministic synthetic weights (no checkpoint load).
    z = jax.random.normal(k_z, (B, D_in), dtype=jnp.float32)
    w3 = jax.random.normal(k_w3, (D_in, D_hid), dtype=jnp.float32) * 0.02
    b3 = jax.random.normal(k_b3, (D_hid,), dtype=jnp.float32) * 0.01
    w4 = jax.random.normal(k_w4, (D_hid, D_out), dtype=jnp.float32) * 0.02
    b4 = jax.random.normal(k_b4, (D_out,), dtype=jnp.float32) * 0.01

    # Pad / cast the weights ONCE (hoisted out of the per-call path).
    params, meta = prepare_decoder_params(w3, b3, w4, b4)
    params = jax.tree.map(jax.block_until_ready, params)

    out = decoder_forward(z, params, meta)
    out = jax.block_until_ready(out)

    ref = decoder_reference(z, w3, b3, w4, b4)
    assert out.shape == (B, D_out)
    assert out.dtype == z.dtype
    # bf16 matmul operands vs f32 reference -> loose tolerance.
    assert jnp.allclose(out, ref, atol=2e-2, rtol=2e-2), "mismatch vs reference"

    # Also exercise the v7x small-batch path: fc4/sigmoid split over 2
    # output-column tiles so both TensorCores get work when grid=(1, ...).
    params2, meta2 = prepare_decoder_params(w3, b3, w4, b4, num_out_tiles=2)
    out2 = jax.block_until_ready(decoder_forward(z, params2, meta2))
    assert out2.shape == (B, D_out)
    assert jnp.allclose(out2, ref, atol=2e-2, rtol=2e-2), "mismatch (split-N path)"

    print("KERNEL_OK")
</pallas_src>

<mosaic_0001>
module attributes {stable_mosaic.version = 11 : i64} {
  func.func @decoder_kernel(%arg0: i32, %arg1: i32, %arg2: memref<16x128xbf16, #tpu.memory_space<vmem>>, %arg3: memref<128x512xbf16, #tpu.memory_space<vmem>>, %arg4: memref<1x512xf32, #tpu.memory_space<vmem>>, %arg5: memref<512x784xbf16, #tpu.memory_space<vmem>>, %arg6: memref<1x784xf32, #tpu.memory_space<vmem>>, %arg7: memref<16x784xf32, #tpu.memory_space<vmem>>) attributes {dimension_semantics = [#tpu.dimension_semantics<parallel>, #tpu.dimension_semantics<parallel>], iteration_bounds = array<i64: 1, 1>, scalar_prefetch = 0 : i64, scratch_operands = 0 : i64, tpu.core_type = #tpu.core_type<tc>, window_params = [{transform_indices = @transform_0, window_bounds = array<i64: 16, 128>}, {pipeline_mode = #tpu.pipeline_mode<synchronous>, transform_indices = @transform_1, window_bounds = array<i64: 128, 512>}, {pipeline_mode = #tpu.pipeline_mode<synchronous>, transform_indices = @transform_2, window_bounds = array<i64: 1, 512>}, {transform_indices = @transform_3, window_bounds = array<i64: 512, 784>}, {transform_indices = @transform_4, window_bounds = array<i64: 1, 784>}, {transform_indices = @transform_5, window_bounds = array<i64: 16, 784>}]} {
    %c0 = arith.constant 0 : index
    %c0_0 = arith.constant 0 : index
    %0 = vector.load %arg2[%c0, %c0_0] : memref<16x128xbf16, #tpu.memory_space<vmem>>, vector<16x128xbf16>
    %c0_1 = arith.constant 0 : index
    %c0_2 = arith.constant 0 : index
    %1 = vector.load %arg3[%c0_1, %c0_2] : memref<128x512xbf16, #tpu.memory_space<vmem>>, vector<128x512xbf16>
    %cst = arith.constant dense<0.000000e+00> : vector<16x512xf32>
    %2 = tpu.matmul %0, %1, %cst {dimension_numbers = #tpu.dot_dimension_numbers<[1], [0], [0], [1], [0, 0, 1, 1], [], []>} : vector<16x128xbf16>, vector<128x512xbf16>, vector<16x512xf32> -> vector<16x512xf32>
    %c0_3 = arith.constant 0 : index
    %c0_4 = arith.constant 0 : index
    %3 = vector.load %arg4[%c0_3, %c0_4] : memref<1x512xf32, #tpu.memory_space<vmem>>, vector<1x512xf32>
    %4 = vector.broadcast %3 : vector<1x512xf32> to vector<16x512xf32>
    %5 = arith.addf %2, %4 : vector<16x512xf32>
    %cst_5 = arith.constant 0.000000e+00 : f32
    %6 = vector.broadcast %cst_5 : f32 to vector<16x512xf32>
    %7 = arith.maximumf %5, %6 : vector<16x512xf32>
    %8 = arith.truncf %7 : vector<16x512xf32> to vector<16x512xbf16>
    %c0_6 = arith.constant 0 : index
    %c0_7 = arith.constant 0 : index
    %9 = vector.load %arg5[%c0_6, %c0_7] : memref<512x784xbf16, #tpu.memory_space<vmem>>, vector<512x784xbf16>
    %cst_8 = arith.constant dense<0.000000e+00> : vector<16x784xf32>
    %10 = tpu.matmul %8, %9, %cst_8 {dimension_numbers = #tpu.dot_dimension_numbers<[1], [0], [0], [1], [0, 0, 1, 1], [], []>} : vector<16x512xbf16>, vector<512x784xbf16>, vector<16x784xf32> -> vector<16x784xf32>
    %c0_9 = arith.constant 0 : index
    %c0_10 = arith.constant 0 : index
    %11 = vector.load %arg6[%c0_9, %c0_10] : memref<1x784xf32, #tpu.memory_space<vmem>>, vector<1x784xf32>
    %12 = vector.broadcast %11 : vector<1x784xf32> to vector<16x784xf32>
    %13 = arith.addf %10, %12 : vector<16x784xf32>
    %14 = arith.negf %13 : vector<16x784xf32>
    %15 = math.exp %14 : vector<16x784xf32>
    %cst_11 = arith.constant 1.000000e+00 : f32
    %16 = vector.broadcast %cst_11 : f32 to vector<16x784xf32>
    %17 = arith.addf %16, %15 : vector<16x784xf32>
    %18 = arith.divf %16, %17 : vector<16x784xf32>
    %c0_12 = arith.constant 0 : index
    %c0_13 = arith.constant 0 : index
    %19 = vector.load %arg7[%c0_12, %c0_13] : memref<16x784xf32, #tpu.memory_space<vmem>>, vector<16x784xf32>
    tpu.vector_store %arg7[%c0_12, %c0_13], %18 {strides = array<i32>} : memref<16x784xf32, #tpu.memory_space<vmem>>, vector<16x784xf32>,
    return
  }
  func.func @transform_0(%arg0: i32, %arg1: i32) -> (i32, i32) {
    %c0_i32 = arith.constant 0 : i32
    %c0_i32_0 = arith.constant 0 : i32
    return %arg0, %c0_i32 : i32, i32
  }
  func.func @transform_1(%arg0: i32, %arg1: i32) -> (i32, i32) {
    %c0_i32 = arith.constant 0 : i32
    %c0_i32_0 = arith.constant 0 : i32
    %c0_i32_1 = arith.constant 0 : i32
    return %c0_i32, %c0_i32_0 : i32, i32
  }
  func.func @transform_2(%arg0: i32, %arg1: i32) -> (i32, i32) {
    %c0_i32 = arith.constant 0 : i32
    %c0_i32_0 = arith.constant 0 : i32
    %c0_i32_1 = arith.constant 0 : i32
    return %c0_i32, %c0_i32_0 : i32, i32
  }
  func.func @transform_3(%arg0: i32, %arg1: i32) -> (i32, i32) {
    %c0_i32 = arith.constant 0 : i32
    %c0_i32_0 = arith.constant 0 : i32
    return %c0_i32, %arg1 : i32, i32
  }
  func.func @transform_4(%arg0: i32, %arg1: i32) -> (i32, i32) {
    %c0_i32 = arith.constant 0 : i32
    %c0_i32_0 = arith.constant 0 : i32
    return %c0_i32, %arg1 : i32, i32
  }
  func.func @transform_5(%arg0: i32, %arg1: i32) -> (i32, i32) {
    %c0_i32 = arith.constant 0 : i32
    return %arg0, %arg1 : i32, i32
  }
}

</mosaic_0001>

<llo_original>
// kernel: tpu_custom_call.1
$region0: #{tpu_custom_call.1}
  #allocation0 [shape = 'u32[]', space=smem, size = 0x4, offset = 0x4, fixed_abs, tag = 'smem constant byte address 0x4 - core index']
  #allocation1 [shape = 'u32[72,128]{1,0:T(1,128)}', space=vmem, size = 0x9000, scoped, tag = 'internal scratch']
  %s0 = inlined_call_operand.vmem [shape: bf16[16,128], index: 0, kind: input, shape index: {}]
  %s1 = inlined_call_operand.vmem [shape: bf16[128,512], index: 1, kind: input, shape index: {}]
  %s2 = inlined_call_operand.vmem [shape: f32[1,512], index: 2, kind: input, shape index: {}]
  %s3 = inlined_call_operand.vmem [shape: bf16[512,784], index: 3, kind: input, shape index: {}]
  %s4 = inlined_call_operand.vmem [shape: f32[1,784], index: 4, kind: input, shape index: {}]
  %s5 = inlined_call_operand.hbm [shape: f32[16,784], index: 5, kind: output, shape index: {}]
  %s6 = sld [smem:[#allocation0]]
  $region30: #{tpu_custom_call.1} parent=0
    _
  %s8 = ssub.s32 1, %s6
  %s9 = scalar_select 0, %s8, %s6
  $region1: #{tpu_custom_call.1} parent=0
    #allocation2 [shape = 'u8[57344]{0}', space=vmem, size = 0xe000, scoped, tag = 'output window, operand 0, single buffered']
    #allocation3 [shape = 's32[1]{0}', space=sflag, size = 0x4, scoped, tag = 'scoped memory for tpu_custom_call.1']
    %10 = vsyncpa [#allocation3], 0
    // Predicated region
    $region2: #{tpu_custom_call.1} parent=1 // pred_check
      _
    $region3: #{tpu_custom_call.1} parent=1 // pred_check_branch
      %12 = sbr.rel (0) target = $region5
    $region4: #{tpu_custom_call.1} parent=1 // pred_region
      _
    $region5: #{tpu_custom_call.1} parent=1 // pred_fallthru
      _
    // Predicated region
    $region6: #{tpu_custom_call.1} parent=1 // pred_check
      _
    $region7: #{tpu_custom_call.1} parent=1 // pred_check_branch
      %14 = sbr.rel (0) target = $region9
    $region8: #{tpu_custom_call.1} parent=1 // pred_region
      _
    $region9: #{tpu_custom_call.1} parent=1 // pred_fallthru
      _
    // Predicated region
    $region10: #{tpu_custom_call.1} parent=1 // pred_check
      _
    $region11: #{tpu_custom_call.1} parent=1 // pred_check_branch
      %16 = sbr.rel (0) target = $region13
    $region12: #{tpu_custom_call.1} parent=1 // pred_region
      _
    $region13: #{tpu_custom_call.1} parent=1 // pred_fallthru
      _
    // Predicated region
    $region14: #{tpu_custom_call.1} parent=1 // pred_check
      _
    $region15: #{tpu_custom_call.1} parent=1 // pred_check_branch
      %18 = sbr.rel (0) target = $region17
    $region16: #{tpu_custom_call.1} parent=1 // pred_region
      _
    $region17: #{tpu_custom_call.1} parent=1 // pred_fallthru
      _
    // Predicated region
    $region18: #{tpu_custom_call.1} parent=1 // pred_check
      _
    $region19: #{tpu_custom_call.1} parent=1 // pred_check_branch
      %20 = sbr.rel (0) target = $region21
    $region20: #{tpu_custom_call.1} parent=1 // pred_region
      _
    $region21: #{tpu_custom_call.1} parent=1 // pred_fallthru
      _
    %v21 = vld [vmem:[%s0] sm:$0xf]
    %v22 = vld [vmem:[%s0 + $0x4] sm:$0xf]
    %v23 = vld [vmem:[%s1] sm:$0xff]
    %v24 = vld [vmem:[%s1 + $0x8] sm:$0xff]
    %v25 = vld [vmem:[%s1 + $0x10] sm:$0xff]
    %v26 = vld [vmem:[%s1 + $0x18] sm:$0xff]
    %v27 = vld [vmem:[%s1 + $0x20] sm:$0xff]
    %v28 = vld [vmem:[%s1 + $0x28] sm:$0xff]
    %v29 = vld [vmem:[%s1 + $0x30] sm:$0xff]
    %v30 = vld [vmem:[%s1 + $0x38] sm:$0xff]
    %v31 = vld [vmem:[%s1 + $0x40] sm:$0xff]
    %v32 = vld [vmem:[%s1 + $0x48] sm:$0xff]
    %v33 = vld [vmem:[%s1 + $0x50] sm:$0xff]
    %v34 = vld [vmem:[%s1 + $0x58] sm:$0xff]
    %v35 = vld [vmem:[%s1 + $0x60] sm:$0xff]
    %v36 = vld [vmem:[%s1 + $0x68] sm:$0xff]
    %v37 = vld [vmem:[%s1 + $0x70] sm:$0xff]
    %v38 = vld [vmem:[%s1 + $0x78] sm:$0xff]
    %v39 = vld [vmem:[%s1 + $0x80] sm:$0xff]
    %v40 = vld [vmem:[%s1 + $0x88] sm:$0xff]
    %v41 = vld [vmem:[%s1 + $0x90] sm:$0xff]
    %v42 = vld [vmem:[%s1 + $0x98] sm:$0xff]
    %v43 = vld [vmem:[%s1 + $0xa0] sm:$0xff]
    %v44 = vld [vmem:[%s1 + $0xa8] sm:$0xff]
    %v45 = vld [vmem:[%s1 + $0xb0] sm:$0xff]
    %v46 = vld [vmem:[%s1 + $0xb8] sm:$0xff]
    %v47 = vld [vmem:[%s1 + $0xc0] sm:$0xff]
    %v48 = vld [vmem:[%s1 + $0xc8] sm:$0xff]
    %v49 = vld [vmem:[%s1 + $0xd0] sm:$0xff]
    %v50 = vld [vmem:[%s1 + $0xd8] sm:$0xff]
    %v51 = vld [vmem:[%s1 + $0xe0] sm:$0xff]
    %v52 = vld [vmem:[%s1 + $0xe8] sm:$0xff]
    %v53 = vld [vmem:[%s1 + $0xf0] sm:$0xff]
    %v54 = vld [vmem:[%s1 + $0xf8] sm:$0xff]
    %v55 = vld [vmem:[%s2] sm:$0xf]
    %v57 = vperm.slane %v55, 0
    %v58 = vperm.slane %v55, 1
    %v59 = vperm.slane %v55, 2
    %v60 = vperm.slane %v55, 3
    %v67 = vunpack.c.l.b16 %v21
    %v68 = vunpack.c.l.b16 %v22
    %v69 = vpack.c.b16 %v68, %v67
    %v103 = vunpack.c.l.b16 %v23
    %v104 = vunpack.c.h.b16 %v23
    %v105 = vunpack.c.l.b16 %v24
    %v106 = vunpack.c.h.b16 %v24
    %v107 = vunpack.c.l.b16 %v25
    %v108 = vunpack.c.h.b16 %v25
    %v109 = vunpack.c.l.b16 %v26
    %v110 = vunpack.c.h.b16 %v26
    %v111 = vunpack.c.l.b16 %v27
    %v112 = vunpack.c.h.b16 %v27
    %v113 = vunpack.c.l.b16 %v28
    %v114 = vunpack.c.h.b16 %v28
    %v115 = vunpack.c.l.b16 %v29
    %v116 = vunpack.c.h.b16 %v29
    %v117 = vunpack.c.l.b16 %v30
    %v118 = vunpack.c.h.b16 %v30
    %v119 = vunpack.c.l.b16 %v31
    %v120 = vunpack.c.h.b16 %v31
    %v121 = vunpack.c.l.b16 %v32
    %v122 = vunpack.c.h.b16 %v32
    %v123 = vunpack.c.l.b16 %v33
    %v124 = vunpack.c.h.b16 %v33
    %v125 = vunpack.c.l.b16 %v34
    %v126 = vunpack.c.h.b16 %v34
    %v127 = vunpack.c.l.b16 %v35
    %v128 = vunpack.c.h.b16 %v35
    %v129 = vunpack.c.l.b16 %v36
    %v130 = vunpack.c.h.b16 %v36
    %v131 = vunpack.c.l.b16 %v37
    %v132 = vunpack.c.h.b16 %v37
    %v133 = vunpack.c.l.b16 %v38
    %v134 = vunpack.c.h.b16 %v38
    %v135 = vunpack.c.l.b16 %v39
    %v136 = vunpack.c.h.b16 %v39
    %v137 = vunpack.c.l.b16 %v40
    %v138 = vunpack.c.h.b16 %v40
    %v139 = vunpack.c.l.b16 %v41
    %v140 = vunpack.c.h.b16 %v41
    %v141 = vunpack.c.l.b16 %v42
    %v142 = vunpack.c.h.b16 %v42
    %v143 = vunpack.c.l.b16 %v43
    %v144 = vunpack.c.h.b16 %v43
    %v145 = vunpack.c.l.b16 %v44
    %v146 = vunpack.c.h.b16 %v44
    %v147 = vunpack.c.l.b16 %v45
    %v148 = vunpack.c.h.b16 %v45
    %v149 = vunpack.c.l.b16 %v46
    %v150 = vunpack.c.h.b16 %v46
    %v151 = vunpack.c.l.b16 %v47
    %v152 = vunpack.c.h.b16 %v47
    %v153 = vunpack.c.l.b16 %v48
    %v154 = vunpack.c.h.b16 %v48
    %v155 = vunpack.c.l.b16 %v49
    %v156 = vunpack.c.h.b16 %v49
    %v157 = vunpack.c.l.b16 %v50
    %v158 = vunpack.c.h.b16 %v50
    %v159 = vunpack.c.l.b16 %v51
    %v160 = vunpack.c.h.b16 %v51
    %v161 = vunpack.c.l.b16 %v52
    %v162 = vunpack.c.h.b16 %v52
    %v163 = vunpack.c.l.b16 %v53
    %v164 = vunpack.c.h.b16 %v53
    %v165 = vunpack.c.l.b16 %v54
    %v166 = vunpack.c.h.b16 %v54
    %v167 = vpack.c.b16 %v107, %v103
    %v168 = vpack.c.b16 %v108, %v104
    %v169 = vpack.c.b16 %v109, %v105
    %v170 = vpack.c.b16 %v110, %v106
    %v171 = vpack.c.b16 %v115, %v111
    %v172 = vpack.c.b16 %v116, %v112
    %v173 = vpack.c.b16 %v117, %v113
    %v174 = vpack.c.b16 %v118, %v114
    %v175 = vpack.c.b16 %v123, %v119
    %v176 = vpack.c.b16 %v124, %v120
    %v177 = vpack.c.b16 %v125, %v121
    %v178 = vpack.c.b16 %v126, %v122
    %v179 = vpack.c.b16 %v131, %v127
    %v180 = vpack.c.b16 %v132, %v128
    %v181 = vpack.c.b16 %v133, %v129
    %v182 = vpack.c.b16 %v134, %v130
    %v183 = vpack.c.b16 %v139, %v135
    %v184 = vpack.c.b16 %v140, %v136
    %v185 = vpack.c.b16 %v141, %v137
    %v186 = vpack.c.b16 %v142, %v138
    %v187 = vpack.c.b16 %v147, %v143
    %v188 = vpack.c.b16 %v148, %v144
    %v189 = vpack.c.b16 %v149, %v145
    %v190 = vpack.c.b16 %v150, %v146
    %v191 = vpack.c.b16 %v155, %v151
    %v192 = vpack.c.b16 %v156, %v152
    %v193 = vpack.c.b16 %v157, %v153
    %v194 = vpack.c.b16 %v158, %v154
    %v195 = vpack.c.b16 %v163, %v159
    %v196 = vpack.c.b16 %v164, %v160
    %v197 = vpack.c.b16 %v165, %v161
    %v198 = vpack.c.b16 %v166, %v162
    %231 = vmatpush.bf16.msra.mxu0 %v195
    %232 = vmatpush.bf16.msra.mxu0 %v191
    %233 = vmatpush.bf16.msra.mxu0 %v187
    %234 = vmatpush.bf16.msra.mxu0 %v183
    %235 = vmatpush.bf16.msra.mxu0 %v179
    %236 = vmatpush.bf16.msra.mxu0 %v175
    %237 = vmatpush.bf16.msra.mxu0 %v171
    %238 = vmatpush.bf16.msra.mxu0 %v167
    %239 = vmatmul.bf16.gmra.mxu0 %v69
    %v240 = vpop.f32.mrf.mxu0
    %v241 = vadd.f32 %v57, %v240
    %v242 = vpop.f32.mrf.mxu0
    %v243 = vadd.f32 %v57, %v242
    %244 = vdwg.mxu0
    %245 = vmatpush.bf16.msra.mxu0 %v196
    %246 = vmatpush.bf16.msra.mxu0 %v192
    %247 = vmatpush.bf16.msra.mxu0 %v188
    %248 = vmatpush.bf16.msra.mxu0 %v184
    %249 = vmatpush.bf16.msra.mxu0 %v180
    %250 = vmatpush.bf16.msra.mxu0 %v176
    %251 = vmatpush.bf16.msra.mxu0 %v172
    %252 = vmatpush.bf16.msra.mxu0 %v168
    %253 = vmatmul.bf16.gmra.mxu0 %v69
    %v254 = vpop.f32.mrf.mxu0
    %v255 = vadd.f32 %v58, %v254
    %v256 = vpop.f32.mrf.mxu0
    %v257 = vadd.f32 %v58, %v256
    %258 = vdwg.mxu0
    %259 = vmatpush.bf16.msra.mxu0 %v197
    %260 = vmatpush.bf16.msra.mxu0 %v193
    %261 = vmatpush.bf16.msra.mxu0 %v189
    %262 = vmatpush.bf16.msra.mxu0 %v185
    %263 = vmatpush.bf16.msra.mxu0 %v181
    %264 = vmatpush.bf16.msra.mxu0 %v177
    %265 = vmatpush.bf16.msra.mxu0 %v173
    %266 = vmatpush.bf16.msra.mxu0 %v169
    %267 = vmatmul.bf16.gmra.mxu0 %v69
    %v268 = vpop.f32.mrf.mxu0
    %v269 = vadd.f32 %v59, %v268
    %v270 = vpop.f32.mrf.mxu0
    %v271 = vadd.f32 %v59, %v270
    %272 = vdwg.mxu0
    %273 = vmatpush.bf16.msra.mxu0 %v198
    %274 = vmatpush.bf16.msra.mxu0 %v194
    %275 = vmatpush.bf16.msra.mxu0 %v190
    %276 = vmatpush.bf16.msra.mxu0 %v186
    %277 = vmatpush.bf16.msra.mxu0 %v182
    %278 = vmatpush.bf16.msra.mxu0 %v178
    %279 = vmatpush.bf16.msra.mxu0 %v174
    %280 = vmatpush.bf16.msra.mxu0 %v170
    %281 = vmatmul.bf16.gmra.mxu0 %v69
    %v282 = vpop.f32.mrf.mxu0
    %v283 = vadd.f32 %v60, %v282
    %v284 = vpop.f32.mrf.mxu0
    %v285 = vadd.f32 %v60, %v284
    %286 = vdwg.mxu0
    %v287 = vmax.f32 %v241, 0.0
    %v288 = vmax.f32 %v255, 0.0
    %v289 = vmax.f32 %v269, 0.0
    %v290 = vmax.f32 %v283, 0.0
    %v291 = vmax.f32 %v243, 0.0
    %v292 = vmax.f32 %v257, 0.0
    %v293 = vmax.f32 %v271, 0.0
    %v294 = vmax.f32 %v285, 0.0
    %v295 = vpack.c.bf16 %v291, %v287
    %v296 = vpack.c.bf16 %v292, %v288
    %v297 = vpack.c.bf16 %v293, %v289
    %v298 = vpack.c.bf16 %v294, %v290
    %v299 = vld [vmem:[%s3] sm:$0xff]
    %v300 = vld [vmem:[%s3 + $0x8] sm:$0xff]
    %v301 = vld [vmem:[%s3 + $0x10] sm:$0xff]
    %v302 = vld [vmem:[%s3 + $0x18] sm:$0xf]
    %v303 = vld [vmem:[%s3 + $0x1c] sm:$0xff]
    %v304 = vld [vmem:[%s3 + $0x24] sm:$0xff]
    %v305 = vld [vmem:[%s3 + $0x2c] sm:$0xff]
    %v306 = vld [vmem:[%s3 + $0x34] sm:$0xf]
    %v307 = vld [vmem:[%s3 + $0x38] sm:$0xff]
    %v308 = vld [vmem:[%s3 + $0x40] sm:$0xff]
    %v309 = vld [vmem:[%s3 + $0x48] sm:$0xff]
    %v310 = vld [vmem:[%s3 + $0x50] sm:$0xf]
    %v311 = vld [vmem:[%s3 + $0x54] sm:$0xff]
    %v312 = vld [vmem:[%s3 + $0x5c] sm:$0xff]
    %v313 = vld [vmem:[%s3 + $0x64] sm:$0xff]
    %v314 = vld [vmem:[%s3 + $0x6c] sm:$0xf]
    %v315 = vld [vmem:[%s3 + $0x70] sm:$0xff]
    %v316 = vld [vmem:[%s3 + $0x78] sm:$0xff]
    %v317 = vld [vmem:[%s3 + $0x80] sm:$0xff]
    %v318 = vld [vmem:[%s3 + $0x88] sm:$0xf]
    %v319 = vld [vmem:[%s3 + $0x8c] sm:$0xff]
    %v320 = vld [vmem:[%s3 + $0x94] sm:$0xff]
    %v321 = vld [vmem:[%s3 + $0x9c] sm:$0xff]
    %v322 = vld [vmem:[%s3 + $0xa4] sm:$0xf]
    %v323 = vld [vmem:[%s3 + $0xa8] sm:$0xff]
    %v324 = vld [vmem:[%s3 + $0xb0] sm:$0xff]
    %v325 = vld [vmem:[%s3 + $0xb8] sm:$0xff]
    %v326 = vld [vmem:[%s3 + $0xc0] sm:$0xf]
    %v327 = vld [vmem:[%s3 + $0xc4] sm:$0xff]
    %v328 = vld [vmem:[%s3 + $0xcc] sm:$0xff]
    %v329 = vld [vmem:[%s3 + $0xd4] sm:$0xff]
    %v330 = vld [vmem:[%s3 + $0xdc] sm:$0xf]
    %v331 = vld [vmem:[%s3 + $0xe0] sm:$0xff]
    %v332 = vld [vmem:[%s3 + $0xe8] sm:$0xff]
    %v333 = vld [vmem:[%s3 + $0xf0] sm:$0xff]
    %v334 = vld [vmem:[%s3 + $0xf8] sm:$0xf]
    %v335 = vld [vmem:[%s3 + $0xfc] sm:$0xff]
    %v336 = vld [vmem:[%s3 + $0x104] sm:$0xff]
    %v337 = vld [vmem:[%s3 + $0x10c] sm:$0xff]
    %v338 = vld [vmem:[%s3 + $0x114] sm:$0xf]
    %v339 = vld [vmem:[%s3 + $0x118] sm:$0xff]
    %v340 = vld [vmem:[%s3 + $0x120] sm:$0xff]
    %v341 = vld [vmem:[%s3 + $0x128] sm:$0xff]
    %v342 = vld [vmem:[%s3 + $0x130] sm:$0xf]
    %v343 = vld [vmem:[%s3 + $0x134] sm:$0xff]
    %v344 = vld [vmem:[%s3 + $0x13c] sm:$0xff]
    %v345 = vld [vmem:[%s3 + $0x144] sm:$0xff]
    %v346 = vld [vmem:[%s3 + $0x14c] sm:$0xf]
    %v347 = vld [vmem:[%s3 + $0x150] sm:$0xff]
    %v348 = vld [vmem:[%s3 + $0x158] sm:$0xff]
    %v349 = vld [vmem:[%s3 + $0x160] sm:$0xff]
    %v350 = vld [vmem:[%s3 + $0x168] sm:$0xf]
    %v351 = vld [vmem:[%s3 + $0x16c] sm:$0xff]
    %v352 = vld [vmem:[%s3 + $0x174] sm:$0xff]
    %v353 = vld [vmem:[%s3 + $0x17c] sm:$0xff]
    %v354 = vld [vmem:[%s3 + $0x184] sm:$0xf]
    %v355 = vld [vmem:[%s3 + $0x188] sm:$0xff]
    %v356 = vld [vmem:[%s3 + $0x190] sm:$0xff]
    %v357 = vld [vmem:[%s3 + $0x198] sm:$0xff]
    %v358 = vld [vmem:[%s3 + $0x1a0] sm:$0xf]
    %v359 = vld [vmem:[%s3 + $0x1a4] sm:$0xff]
    %v360 = vld [vmem:[%s3 + $0x1ac] sm:$0xff]
    %v361 = vld [vmem:[%s3 + $0x1b4] sm:$0xff]
    %v362 = vld [vmem:[%s3 + $0x1bc] sm:$0xf]
    %v363 = vld [vmem:[%s3 + $0x1c0] sm:$0xff]
    %v364 = vld [vmem:[%s3 + $0x1c8] sm:$0xff]
    %v365 = vld [vmem:[%s3 + $0x1d0] sm:$0xff]
    %v366 = vld [vmem:[%s3 + $0x1d8] sm:$0xf]
    %v367 = vld [vmem:[%s3 + $0x1dc] sm:$0xff]
    %v368 = vld [vmem:[%s3 + $0x1e4] sm:$0xff]
    %v369 = vld [vmem:[%s3 + $0x1ec] sm:$0xff]
    %v370 = vld [vmem:[%s3 + $0x1f4] sm:$0xf]
    %v371 = vld [vmem:[%s3 + $0x1f8] sm:$0xff]
    %v372 = vld [vmem:[%s3 + $0x200] sm:$0xff]
    %v373 = vld [vmem:[%s3 + $0x208] sm:$0xff]
    %v374 = vld [vmem:[%s3 + $0x210] sm:$0xf]
    %v375 = vld [vmem:[%s3 + $0x214] sm:$0xff]
    %v376 = vld [vmem:[%s3 + $0x21c] sm:$0xff]
    %v377 = vld [vmem:[%s3 + $0x224] sm:$0xff]
    %v378 = vld [vmem:[%s3 + $0x22c] sm:$0xf]
    %v379 = vld [vmem:[%s3 + $0x230] sm:$0xff]
    %v380 = vld [vmem:[%s3 + $0x238] sm:$0xff]
    %v381 = vld [vmem:[%s3 + $0x240] sm:$0xff]
    %v382 = vld [vmem:[%s3 + $0x248] sm:$0xf]
    %v383 = vld [vmem:[%s3 + $0x24c] sm:$0xff]
    %v384 = vld [vmem:[%s3 + $0x254] sm:$0xff]
    %v385 = vld [vmem:[%s3 + $0x25c] sm:$0xff]
    %v386 = vld [vmem:[%s3 + $0x264] sm:$0xf]
    %v387 = vld [vmem:[%s3 + $0x268] sm:$0xff]
    %v388 = vld [vmem:[%s3 + $0x270] sm:$0xff]
    %v389 = vld [vmem:[%s3 + $0x278] sm:$0xff]
    %v390 = vld [vmem:[%s3 + $0x280] sm:$0xf]
    %v391 = vld [vmem:[%s3 + $0x284] sm:$0xff]
    %v392 = vld [vmem:[%s3 + $0x28c] sm:$0xff]
    %v393 = vld [vmem:[%s3 + $0x294] sm:$0xff]
    %v394 = vld [vmem:[%s3 + $0x29c] sm:$0xf]
    %v395 = vld [vmem:[%s3 + $0x2a0] sm:$0xff]
    %v396 = vld [vmem:[%s3 + $0x2a8] sm:$0xff]
    %v397 = vld [vmem:[%s3 + $0x2b0] sm:$0xff]
    %v398 = vld [vmem:[%s3 + $0x2b8] sm:$0xf]
    %v399 = vld [vmem:[%s3 + $0x2bc] sm:$0xff]
    %v400 = vld [vmem:[%s3 + $0x2c4] sm:$0xff]
    %v401 = vld [vmem:[%s3 + $0x2cc] sm:$0xff]
    %v402 = vld [vmem:[%s3 + $0x2d4] sm:$0xf]
    %v403 = vld [vmem:[%s3 + $0x2d8] sm:$0xff]
    %v404 = vld [vmem:[%s3 + $0x2e0] sm:$0xff]
    %v405 = vld [vmem:[%s3 + $0x2e8] sm:$0xff]
    %v406 = vld [vmem:[%s3 + $0x2f0] sm:$0xf]
    %v407 = vld [vmem:[%s3 + $0x2f4] sm:$0xff]
    %v408 = vld [vmem:[%s3 + $0x2fc] sm:$0xff]
    %v409 = vld [vmem:[%s3 + $0x304] sm:$0xff]
    %v410 = vld [vmem:[%s3 + $0x30c] sm:$0xf]
    %v411 = vld [vmem:[%s3 + $0x310] sm:$0xff]
    %v412 = vld [vmem:[%s3 + $0x318] sm:$0xff]
    %v413 = vld [vmem:[%s3 + $0x320] sm:$0xff]
    %v414 = vld [vmem:[%s3 + $0x328] sm:$0xf]
    %v415 = vld [vmem:[%s3 + $0x32c] sm:$0xff]
    %v416 = vld [vmem:[%s3 + $0x334] sm:$0xff]
    %v417 = vld [vmem:[%s3 + $0x33c] sm:$0xff]
    %v418 = vld [vmem:[%s3 + $0x344] sm:$0xf]
    %v419 = vld [vmem:[%s3 + $0x348] sm:$0xff]
    %v420 = vld [vmem:[%s3 + $0x350] sm:$0xff]
    %v421 = vld [vmem:[%s3 + $0x358] sm:$0xff]
    %v422 = vld [vmem:[%s3 + $0x360] sm:$0xf]
    %v423 = vld [vmem:[%s3 + $0x364] sm:$0xff]
    %v424 = vld [vmem:[%s3 + $0x36c] sm:$0xff]
    %v425 = vld [vmem:[%s3 + $0x374] sm:$0xff]
    %v426 = vld [vmem:[%s3 + $0x37c] sm:$0xf]
    %v427 = vld [vmem:[%s3 + $0x380] sm:$0xff]
    %v428 = vld [vmem:[%s3 + $0x388] sm:$0xff]
    %v429 = vld [vmem:[%s3 + $0x390] sm:$0xff]
    %v430 = vld [vmem:[%s3 + $0x398] sm:$0xf]
    %v431 = vld [vmem:[%s3 + $0x39c] sm:$0xff]
    %v432 = vld [vmem:[%s3 + $0x3a4] sm:$0xff]
    %v433 = vld [vmem:[%s3 + $0x3ac] sm:$0xff]
    %v434 = vld [vmem:[%s3 + $0x3b4] sm:$0xf]
    %v435 = vld [vmem:[%s3 + $0x3b8] sm:$0xff]
    %v436 = vld [vmem:[%s3 + $0x3c0] sm:$0xff]
    %v437 = vld [vmem:[%s3 + $0x3c8] sm:$0xff]
    %v438 = vld [vmem:[%s3 + $0x3d0] sm:$0xf]
    %v439 = vld [vmem:[%s3 + $0x3d4] sm:$0xff]
    %v440 = vld [vmem:[%s3 + $0x3dc] sm:$0xff]
    %v441 = vld [vmem:[%s3 + $0x3e4] sm:$0xff]
    %v442 = vld [vmem:[%s3 + $0x3ec] sm:$0xf]
    %v443 = vld [vmem:[%s3 + $0x3f0] sm:$0xff]
    %v444 = vld [vmem:[%s3 + $0x3f8] sm:$0xff]
    %v445 = vld [vmem:[%s3 + $0x400] sm:$0xff]
    %v446 = vld [vmem:[%s3 + $0x408] sm:$0xf]
    %v447 = vld [vmem:[%s3 + $0x40c] sm:$0xff]
    %v448 = vld [vmem:[%s3 + $0x414] sm:$0xff]
    %v449 = vld [vmem:[%s3 + $0x41c] sm:$0xff]
    %v450 = vld [vmem:[%s3 + $0x424] sm:$0xf]
    %v451 = vld [vmem:[%s3 + $0x428] sm:$0xff]
    %v452 = vld [vmem:[%s3 + $0x430] sm:$0xff]
    %v453 = vld [vmem:[%s3 + $0x438] sm:$0xff]
    %v454 = vld [vmem:[%s3 + $0x440] sm:$0xf]
    %v455 = vld [vmem:[%s3 + $0x444] sm:$0xff]
    %v456 = vld [vmem:[%s3 + $0x44c] sm:$0xff]
    %v457 = vld [vmem:[%s3 + $0x454] sm:$0xff]
    %v458 = vld [vmem:[%s3 + $0x45c] sm:$0xf]
    %v459 = vld [vmem:[%s3 + $0x460] sm:$0xff]
    %v460 = vld [vmem:[%s3 + $0x468] sm:$0xff]
    %v461 = vld [vmem:[%s3 + $0x470] sm:$0xff]
    %v462 = vld [vmem:[%s3 + $0x478] sm:$0xf]
    %v463 = vld [vmem:[%s3 + $0x47c] sm:$0xff]
    %v464 = vld [vmem:[%s3 + $0x484] sm:$0xff]
    %v465 = vld [vmem:[%s3 + $0x48c] sm:$0xff]
    %v466 = vld [vmem:[%s3 + $0x494] sm:$0xf]
    %v467 = vld [vmem:[%s3 + $0x498] sm:$0xff]
    %v468 = vld [vmem:[%s3 + $0x4a0] sm:$0xff]
    %v469 = vld [vmem:[%s3 + $0x4a8] sm:$0xff]
    %v470 = vld [vmem:[%s3 + $0x4b0] sm:$0xf]
    %v471 = vld [vmem:[%s3 + $0x4b4] sm:$0xff]
    %v472 = vld [vmem:[%s3 + $0x4bc] sm:$0xff]
    %v473 = vld [vmem:[%s3 + $0x4c4] sm:$0xff]
    %v474 = vld [vmem:[%s3 + $0x4cc] sm:$0xf]
    %v475 = vld [vmem:[%s3 + $0x4d0] sm:$0xff]
    %v476 = vld [vmem:[%s3 + $0x4d8] sm:$0xff]
    %v477 = vld [vmem:[%s3 + $0x4e0] sm:$0xff]
    %v478 = vld [vmem:[%s3 + $0x4e8] sm:$0xf]
    %v479 = vld [vmem:[%s3 + $0x4ec] sm:$0xff]
    %v480 = vld [vmem:[%s3 + $0x4f4] sm:$0xff]
    %v481 = vld [vmem:[%s3 + $0x4fc] sm:$0xff]
    %v482 = vld [vmem:[%s3 + $0x504] sm:$0xf]
    %v483 = vld [vmem:[%s3 + $0x508] sm:$0xff]
    %v484 = vld [vmem:[%s3 + $0x510] sm:$0xff]
    %v485 = vld [vmem:[%s3 + $0x518] sm:$0xff]
    %v486 = vld [vmem:[%s3 + $0x520] sm:$0xf]
    %v487 = vld [vmem:[%s3 + $0x524] sm:$0xff]
    %v488 = vld [vmem:[%s3 + $0x52c] sm:$0xff]
    %v489 = vld [vmem:[%s3 + $0x534] sm:$0xff]
    %v490 = vld [vmem:[%s3 + $0x53c] sm:$0xf]
    %v491 = vld [vmem:[%s3 + $0x540] sm:$0xff]
    %v492 = vld [vmem:[%s3 + $0x548] sm:$0xff]
    %v493 = vld [vmem:[%s3 + $0x550] sm:$0xff]
    %v494 = vld [vmem:[%s3 + $0x558] sm:$0xf]
    %v495 = vld [vmem:[%s3 + $0x55c] sm:$0xff]
    %v496 = vld [vmem:[%s3 + $0x564] sm:$0xff]
    %v497 = vld [vmem:[%s3 + $0x56c] sm:$0xff]
    %v498 = vld [vmem:[%s3 + $0x574] sm:$0xf]
    %v499 = vld [vmem:[%s3 + $0x578] sm:$0xff]
    %v500 = vld [vmem:[%s3 + $0x580] sm:$0xff]
    %v501 = vld [vmem:[%s3 + $0x588] sm:$0xff]
    %v502 = vld [vmem:[%s3 + $0x590] sm:$0xf]
    %v503 = vld [vmem:[%s3 + $0x594] sm:$0xff]
    %v504 = vld [vmem:[%s3 + $0x59c] sm:$0xff]
    %v505 = vld [vmem:[%s3 + $0x5a4] sm:$0xff]
    %v506 = vld [vmem:[%s3 + $0x5ac] sm:$0xf]
    %v507 = vld [vmem:[%s3 + $0x5b0] sm:$0xff]
    %v508 = vld [vmem:[%s3 + $0x5b8] sm:$0xff]
    %v509 = vld [vmem:[%s3 + $0x5c0] sm:$0xff]
    %v510 = vld [vmem:[%s3 + $0x5c8] sm:$0xf]
    %v511 = vld [vmem:[%s3 + $0x5cc] sm:$0xff]
    %v512 = vld [vmem:[%s3 + $0x5d4] sm:$0xff]
    %v513 = vld [vmem:[%s3 + $0x5dc] sm:$0xff]
    %v514 = vld [vmem:[%s3 + $0x5e4] sm:$0xf]
    %v515 = vld [vmem:[%s3 + $0x5e8] sm:$0xff]
    %v516 = vld [vmem:[%s3 + $0x5f0] sm:$0xff]
    %v517 = vld [vmem:[%s3 + $0x5f8] sm:$0xff]
    %v518 = vld [vmem:[%s3 + $0x600] sm:$0xf]
    %v519 = vld [vmem:[%s3 + $0x604] sm:$0xff]
    %v520 = vld [vmem:[%s3 + $0x60c] sm:$0xff]
    %v521 = vld [vmem:[%s3 + $0x614] sm:$0xff]
    %v522 = vld [vmem:[%s3 + $0x61c] sm:$0xf]
    %v523 = vld [vmem:[%s3 + $0x620] sm:$0xff]
    %v524 = vld [vmem:[%s3 + $0x628] sm:$0xff]
    %v525 = vld [vmem:[%s3 + $0x630] sm:$0xff]
    %v526 = vld [vmem:[%s3 + $0x638] sm:$0xf]
    %v527 = vld [vmem:[%s3 + $0x63c] sm:$0xff]
    %v528 = vld [vmem:[%s3 + $0x644] sm:$0xff]
    %v529 = vld [vmem:[%s3 + $0x64c] sm:$0xff]
    %v530 = vld [vmem:[%s3 + $0x654] sm:$0xf]
    %v531 = vld [vmem:[%s3 + $0x658] sm:$0xff]
    %v532 = vld [vmem:[%s3 + $0x660] sm:$0xff]
    %v533 = vld [vmem:[%s3 + $0x668] sm:$0xff]
    %v534 = vld [vmem:[%s3 + $0x670] sm:$0xf]
    %v535 = vld [vmem:[%s3 + $0x674] sm:$0xff]
    %v536 = vld [vmem:[%s3 + $0x67c] sm:$0xff]
    %v537 = vld [vmem:[%s3 + $0x684] sm:$0xff]
    %v538 = vld [vmem:[%s3 + $0x68c] sm:$0xf]
    %v539 = vld [vmem:[%s3 + $0x690] sm:$0xff]
    %v540 = vld [vmem:[%s3 + $0x698] sm:$0xff]
    %v541 = vld [vmem:[%s3 + $0x6a0] sm:$0xff]
    %v542 = vld [vmem:[%s3 + $0x6a8] sm:$0xf]
    %v543 = vld [vmem:[%s3 + $0x6ac] sm:$0xff]
    %v544 = vld [vmem:[%s3 + $0x6b4] sm:$0xff]
    %v545 = vld [vmem:[%s3 + $0x6bc] sm:$0xff]
    %v546 = vld [vmem:[%s3 + $0x6c4] sm:$0xf]
    %v547 = vld [vmem:[%s3 + $0x6c8] sm:$0xff]
    %v548 = vld [vmem:[%s3 + $0x6d0] sm:$0xff]
    %v549 = vld [vmem:[%s3 + $0x6d8] sm:$0xff]
    %v550 = vld [vmem:[%s3 + $0x6e0] sm:$0xf]
    %v551 = vld [vmem:[%s3 + $0x6e4] sm:$0xff]
    %v552 = vld [vmem:[%s3 + $0x6ec] sm:$0xff]
    %v553 = vld [vmem:[%s3 + $0x6f4] sm:$0xff]
    %v554 = vld [vmem:[%s3 + $0x6fc] sm:$0xf]
    %v555 = vld [vmem:[%s4] sm:$0x7f]
    %v557 = vperm.slane %v555, 0
    %v558 = vperm.slane %v555, 1
    %v559 = vperm.slane %v555, 2
    %v560 = vperm.slane %v555, 3
    %v561 = vperm.slane %v555, 4
    %v562 = vperm.slane %v555, 5
    %v563 = vperm.slane %v555, 6
    %v827 = vunpack.c.l.b16 %v299
    %v828 = vunpack.c.h.b16 %v299
    %v829 = vunpack.c.l.b16 %v300
    %v830 = vunpack.c.h.b16 %v300
    %v831 = vunpack.c.l.b16 %v301
    %v832 = vunpack.c.h.b16 %v301
    %v833 = vunpack.c.l.b16 %v302
    %v834 = vunpack.c.l.b16 %v303
    %v835 = vunpack.c.h.b16 %v303
    %v836 = vunpack.c.l.b16 %v304
    %v837 = vunpack.c.h.b16 %v304
    %v838 = vunpack.c.l.b16 %v305
    %v839 = vunpack.c.h.b16 %v305
    %v840 = vunpack.c.l.b16 %v306
    %v841 = vunpack.c.l.b16 %v307
    %v842 = vunpack.c.h.b16 %v307
    %v843 = vunpack.c.l.b16 %v308
    %v844 = vunpack.c.h.b16 %v308
    %v845 = vunpack.c.l.b16 %v309
    %v846 = vunpack.c.h.b16 %v309
    %v847 = vunpack.c.l.b16 %v310
    %v848 = vunpack.c.l.b16 %v311
    %v849 = vunpack.c.h.b16 %v311
    %v850 = vunpack.c.l.b16 %v312
    %v851 = vunpack.c.h.b16 %v312
    %v852 = vunpack.c.l.b16 %v313
    %v853 = vunpack.c.h.b16 %v313
    %v854 = vunpack.c.l.b16 %v314
    %v855 = vunpack.c.l.b16 %v315
    %v856 = vunpack.c.h.b16 %v315
    %v857 = vunpack.c.l.b16 %v316
    %v858 = vunpack.c.h.b16 %v316
    %v859 = vunpack.c.l.b16 %v317
    %v860 = vunpack.c.h.b16 %v317
    %v861 = vunpack.c.l.b16 %v318
    %v862 = vunpack.c.l.b16 %v319
    %v863 = vunpack.c.h.b16 %v319
    %v864 = vunpack.c.l.b16 %v320
    %v865 = vunpack.c.h.b16 %v320
    %v866 = vunpack.c.l.b16 %v321
    %v867 = vunpack.c.h.b16 %v321
    %v868 = vunpack.c.l.b16 %v322
    %v869 = vunpack.c.l.b16 %v323
    %v870 = vunpack.c.h.b16 %v323
    %v871 = vunpack.c.l.b16 %v324
    %v872 = vunpack.c.h.b16 %v324
    %v873 = vunpack.c.l.b16 %v325
    %v874 = vunpack.c.h.b16 %v325
    %v875 = vunpack.c.l.b16 %v326
    %v876 = vunpack.c.l.b16 %v327
    %v877 = vunpack.c.h.b16 %v327
    %v878 = vunpack.c.l.b16 %v328
    %v879 = vunpack.c.h.b16 %v328
    %v880 = vunpack.c.l.b16 %v329
    %v881 = vunpack.c.h.b16 %v329
    %v882 = vunpack.c.l.b16 %v330
    %v883 = vunpack.c.l.b16 %v331
    %v884 = vunpack.c.h.b16 %v331
    %v885 = vunpack.c.l.b16 %v332
    %v886 = vunpack.c.h.b16 %v332
    %v887 = vunpack.c.l.b16 %v333
    %v888 = vunpack.c.h.b16 %v333
    %v889 = vunpack.c.l.b16 %v334
    %v890 = vunpack.c.l.b16 %v335
    %v891 = vunpack.c.h.b16 %v335
    %v892 = vunpack.c.l.b16 %v336
    %v893 = vunpack.c.h.b16 %v336
    %v894 = vunpack.c.l.b16 %v337
    %v895 = vunpack.c.h.b16 %v337
    %v896 = vunpack.c.l.b16 %v338
    %v897 = vunpack.c.l.b16 %v339
    %v898 = vunpack.c.h.b16 %v339
    %v899 = vunpack.c.l.b16 %v340
    %v900 = vunpack.c.h.b16 %v340
    %v901 = vunpack.c.l.b16 %v341
    %v902 = vunpack.c.h.b16 %v341
    %v903 = vunpack.c.l.b16 %v342
    %v904 = vunpack.c.l.b16 %v343
    %v905 = vunpack.c.h.b16 %v343
    %v906 = vunpack.c.l.b16 %v344
    %v907 = vunpack.c.h.b16 %v344
    %v908 = vunpack.c.l.b16 %v345
    %v909 = vunpack.c.h.b16 %v345
    %v910 = vunpack.c.l.b16 %v346
    %v911 = vunpack.c.l.b16 %v347
    %v912 = vunpack.c.h.b16 %v347
    %v913 = vunpack.c.l.b16 %v348
    %v914 = vunpack.c.h.b16 %v348
    %v915 = vunpack.c.l.b16 %v349
    %v916 = vunpack.c.h.b16 %v349
    %v917 = vunpack.c.l.b16 %v350
    %v918 = vunpack.c.l.b16 %v351
    %v919 = vunpack.c.h.b16 %v351
    %v920 = vunpack.c.l.b16 %v352
    %v921 = vunpack.c.h.b16 %v352
    %v922 = vunpack.c.l.b16 %v353
    %v923 = vunpack.c.h.b16 %v353
    %v924 = vunpack.c.l.b16 %v354
    %v925 = vunpack.c.l.b16 %v355
    %v926 = vunpack.c.h.b16 %v355
    %v927 = vunpack.c.l.b16 %v356
    %v928 = vunpack.c.h.b16 %v356
    %v929 = vunpack.c.l.b16 %v357
    %v930 = vunpack.c.h.b16 %v357
    %v931 = vunpack.c.l.b16 %v358
    %v932 = vunpack.c.l.b16 %v359
    %v933 = vunpack.c.h.b16 %v359
    %v934 = vunpack.c.l.b16 %v360
    %v935 = vunpack.c.h.b16 %v360
    %v936 = vunpack.c.l.b16 %v361
    %v937 = vunpack.c.h.b16 %v361
    %v938 = vunpack.c.l.b16 %v362
    %v939 = vunpack.c.l.b16 %v363
    %v940 = vunpack.c.h.b16 %v363
    %v941 = vunpack.c.l.b16 %v364
    %v942 = vunpack.c.h.b16 %v364
    %v943 = vunpack.c.l.b16 %v365
    %v944 = vunpack.c.h.b16 %v365
    %v945 = vunpack.c.l.b16 %v366
    %v946 = vunpack.c.l.b16 %v367
    %v947 = vunpack.c.h.b16 %v367
    %v948 = vunpack.c.l.b16 %v368
    %v949 = vunpack.c.h.b16 %v368
    %v950 = vunpack.c.l.b16 %v369
    %v951 = vunpack.c.h.b16 %v369
    %v952 = vunpack.c.l.b16 %v370
    %v953 = vunpack.c.l.b16 %v371
    %v954 = vunpack.c.h.b16 %v371
    %v955 = vunpack.c.l.b16 %v372
    %v956 = vunpack.c.h.b16 %v372
    %v957 = vunpack.c.l.b16 %v373
    %v958 = vunpack.c.h.b16 %v373
    %v959 = vunpack.c.l.b16 %v374
    %v960 = vunpack.c.l.b16 %v375
    %v961 = vunpack.c.h.b16 %v375
    %v962 = vunpack.c.l.b16 %v376
    %v963 = vunpack.c.h.b16 %v376
    %v964 = vunpack.c.l.b16 %v377
    %v965 = vunpack.c.h.b16 %v377
    %v966 = vunpack.c.l.b16 %v378
    %v967 = vunpack.c.l.b16 %v379
    %v968 = vunpack.c.h.b16 %v379
    %v969 = vunpack.c.l.b16 %v380
    %v970 = vunpack.c.h.b16 %v380
    %v971 = vunpack.c.l.b16 %v381
    %v972 = vunpack.c.h.b16 %v381
    %v973 = vunpack.c.l.b16 %v382
    %v974 = vunpack.c.l.b16 %v383
    %v975 = vunpack.c.h.b16 %v383
    %v976 = vunpack.c.l.b16 %v384
    %v977 = vunpack.c.h.b16 %v384
    %v978 = vunpack.c.l.b16 %v385
    %v979 = vunpack.c.h.b16 %v385
    %v980 = vunpack.c.l.b16 %v386
    %v981 = vunpack.c.l.b16 %v387
    %v982 = vunpack.c.h.b16 %v387
    %v983 = vunpack.c.l.b16 %v388
    %v984 = vunpack.c.h.b16 %v388
    %v985 = vunpack.c.l.b16 %v389
    %v986 = vunpack.c.h.b16 %v389
    %v987 = vunpack.c.l.b16 %v390
    %v988 = vunpack.c.l.b16 %v391
    %v989 = vunpack.c.h.b16 %v391
    %v990 = vunpack.c.l.b16 %v392
    %v991 = vunpack.c.h.b16 %v392
    %v992 = vunpack.c.l.b16 %v393
    %v993 = vunpack.c.h.b16 %v393
    %v994 = vunpack.c.l.b16 %v394
    %v995 = vunpack.c.l.b16 %v395
    %v996 = vunpack.c.h.b16 %v395
    %v997 = vunpack.c.l.b16 %v396
    %v998 = vunpack.c.h.b16 %v396
    %v999 = vunpack.c.l.b16 %v397
    %v1000 = vunpack.c.h.b16 %v397
    %v1001 = vunpack.c.l.b16 %v398
    %v1002 = vunpack.c.l.b16 %v399
    %v1003 = vunpack.c.h.b16 %v399
    %v1004 = vunpack.c.l.b16 %v400
    %v1005 = vunpack.c.h.b16 %v400
    %v1006 = vunpack.c.l.b16 %v401
    %v1007 = vunpack.c.h.b16 %v401
    %v1008 = vunpack.c.l.b16 %v402
    %v1009 = vunpack.c.l.b16 %v403
    %v1010 = vunpack.c.h.b16 %v403
    %v1011 = vunpack.c.l.b16 %v404
    %v1012 = vunpack.c.h.b16 %v404
    %v1013 = vunpack.c.l.b16 %v405
    %v1014 = vunpack.c.h.b16 %v405
    %v1015 = vunpack.c.l.b16 %v406
    %v1016 = vunpack.c.l.b16 %v407
    %v1017 = vunpack.c.h.b16 %v407
    %v1018 = vunpack.c.l.b16 %v408
    %v1019 = vunpack.c.h.b16 %v408
    %v1020 = vunpack.c.l.b16 %v409
    %v1021 = vunpack.c.h.b16 %v409
    %v1022 = vunpack.c.l.b16 %v410
    %v1023 = vunpack.c.l.b16 %v411
    %v1024 = vunpack.c.h.b16 %v411
    %v1025 = vunpack.c.l.b16 %v412
    %v1026 = vunpack.c.h.b16 %v412
    %v1027 = vunpack.c.l.b16 %v413
    %v1028 = vunpack.c.h.b16 %v413
    %v1029 = vunpack.c.l.b16 %v414
    %v1030 = vunpack.c.l.b16 %v415
    %v1031 = vunpack.c.h.b16 %v415
    %v1032 = vunpack.c.l.b16 %v416
    %v1033 = vunpack.c.h.b16 %v416
    %v1034 = vunpack.c.l.b16 %v417
    %v1035 = vunpack.c.h.b16 %v417
    %v1036 = vunpack.c.l.b16 %v418
    %v1037 = vunpack.c.l.b16 %v419
    %v1038 = vunpack.c.h.b16 %v419
    %v1039 = vunpack.c.l.b16 %v420
    %v1040 = vunpack.c.h.b16 %v420
    %v1041 = vunpack.c.l.b16 %v421
    %v1042 = vunpack.c.h.b16 %v421
    %v1043 = vunpack.c.l.b16 %v422
    %v1044 = vunpack.c.l.b16 %v423
    %v1045 = vunpack.c.h.b16 %v423
    %v1046 = vunpack.c.l.b16 %v424
    %v1047 = vunpack.c.h.b16 %v424
    %v1048 = vunpack.c.l.b16 %v425
    %v1049 = vunpack.c.h.b16 %v425
    %v1050 = vunpack.c.l.b16 %v426
    %v1051 = vunpack.c.l.b16 %v427
    %v1052 = vunpack.c.h.b16 %v427
    %v1053 = vunpack.c.l.b16 %v428
    %v1054 = vunpack.c.h.b16 %v428
    %v1055 = vunpack.c.l.b16 %v429
    %v1056 = vunpack.c.h.b16 %v429
    %v1057 = vunpack.c.l.b16 %v430
    %v1058 = vunpack.c.l.b16 %v431
    %v1059 = vunpack.c.h.b16 %v431
    %v1060 = vunpack.c.l.b16 %v432
    %v1061 = vunpack.c.h.b16 %v432
    %v1062 = vunpack.c.l.b16 %v433
    %v1063 = vunpack.c.h.b16 %v433
    %v1064 = vunpack.c.l.b16 %v434
    %v1065 = vunpack.c.l.b16 %v435
    %v1066 = vunpack.c.h.b16 %v435
    %v1067 = vunpack.c.l.b16 %v436
    %v1068 = vunpack.c.h.b16 %v436
    %v1069 = vunpack.c.l.b16 %v437
    %v1070 = vunpack.c.h.b16 %v437
    %v1071 = vunpack.c.l.b16 %v438
    %v1072 = vunpack.c.l.b16 %v439
    %v1073 = vunpack.c.h.b16 %v439
    %v1074 = vunpack.c.l.b16 %v440
    %v1075 = vunpack.c.h.b16 %v440
    %v1076 = vunpack.c.l.b16 %v441
    %v1077 = vunpack.c.h.b16 %v441
    %v1078 = vunpack.c.l.b16 %v442
    %v1079 = vunpack.c.l.b16 %v443
    %v1080 = vunpack.c.h.b16 %v443
    %v1081 = vunpack.c.l.b16 %v444
    %v1082 = vunpack.c.h.b16 %v444
    %v1083 = vunpack.c.l.b16 %v445
    %v1084 = vunpack.c.h.b16 %v445
    %v1085 = vunpack.c.l.b16 %v446
    %v1086 = vunpack.c.l.b16 %v447
    %v1087 = vunpack.c.h.b16 %v447
    %v1088 = vunpack.c.l.b16 %v448
    %v1089 = vunpack.c.h.b16 %v448
    %v1090 = vunpack.c.l.b16 %v449
    %v1091 = vunpack.c.h.b16 %v449
    %v1092 = vunpack.c.l.b16 %v450
    %v1093 = vunpack.c.l.b16 %v451
    %v1094 = vunpack.c.h.b16 %v451
    %v1095 = vunpack.c.l.b16 %v452
    %v1096 = vunpack.c.h.b16 %v452
    %v1097 = vunpack.c.l.b16 %v453
    %v1098 = vunpack.c.h.b16 %v453
    %v1099 = vunpack.c.l.b16 %v454
    %v1100 = vunpack.c.l.b16 %v455
    %v1101 = vunpack.c.h.b16 %v455
    %v1102 = vunpack.c.l.b16 %v456
    %v1103 = vunpack.c.h.b16 %v456
    %v1104 = vunpack.c.l.b16 %v457
    %v1105 = vunpack.c.h.b16 %v457
    %v1106 = vunpack.c.l.b16 %v458
    %v1107 = vunpack.c.l.b16 %v459
    %v1108 = vunpack.c.h.b16 %v459
    %v1109 = vunpack.c.l.b16 %v460
    %v1110 = vunpack.c.h.b16 %v460
    %v1111 = vunpack.c.l.b16 %v461
    %v1112 = vunpack.c.h.b16 %v461
    %v1113 = vunpack.c.l.b16 %v462
    %v1114 = vunpack.c.l.b16 %v463
    %v1115 = vunpack.c.h.b16 %v463
    %v1116 = vunpack.c.l.b16 %v464
    %v1117 = vunpack.c.h.b16 %v464
    %v1118 = vunpack.c.l.b16 %v465
    %v1119 = vunpack.c.h.b16 %v465
    %v1120 = vunpack.c.l.b16 %v466
    %v1121 = vunpack.c.l.b16 %v467
    %v1122 = vunpack.c.h.b16 %v467
    %v1123 = vunpack.c.l.b16 %v468
    %v1124 = vunpack.c.h.b16 %v468
    %v1125 = vunpack.c.l.b16 %v469
    %v1126 = vunpack.c.h.b16 %v469
    %v1127 = vunpack.c.l.b16 %v470
    %v1128 = vunpack.c.l.b16 %v471
    %v1129 = vunpack.c.h.b16 %v471
    %v1130 = vunpack.c.l.b16 %v472
    %v1131 = vunpack.c.h.b16 %v472
    %v1132 = vunpack.c.l.b16 %v473
    %v1133 = vunpack.c.h.b16 %v473
    %v1134 = vunpack.c.l.b16 %v474
    %v1135 = vunpack.c.l.b16 %v475
    %v1136 = vunpack.c.h.b16 %v475
    %v1137 = vunpack.c.l.b16 %v476
    %v1138 = vunpack.c.h.b16 %v476
    %v1139 = vunpack.c.l.b16 %v477
    %v1140 = vunpack.c.h.b16 %v477
    %v1141 = vunpack.c.l.b16 %v478
    %v1142 = vunpack.c.l.b16 %v479
    %v1143 = vunpack.c.h.b16 %v479
    %v1144 = vunpack.c.l.b16 %v480
    %v1145 = vunpack.c.h.b16 %v480
    %v1146 = vunpack.c.l.b16 %v481
    %v1147 = vunpack.c.h.b16 %v481
    %v1148 = vunpack.c.l.b16 %v482
    %v1149 = vunpack.c.l.b16 %v483
    %v1150 = vunpack.c.h.b16 %v483
    %v1151 = vunpack.c.l.b16 %v484
    %v1152 = vunpack.c.h.b16 %v484
    %v1153 = vunpack.c.l.b16 %v485
    %v1154 = vunpack.c.h.b16 %v485
    %v1155 = vunpack.c.l.b16 %v486
    %v1156 = vunpack.c.l.b16 %v487
    %v1157 = vunpack.c.h.b16 %v487
    %v1158 = vunpack.c.l.b16 %v488
    %v1159 = vunpack.c.h.b16 %v488
    %v1160 = vunpack.c.l.b16 %v489
    %v1161 = vunpack.c.h.b16 %v489
    %v1162 = vunpack.c.l.b16 %v490
    %v1163 = vunpack.c.l.b16 %v491
    %v1164 = vunpack.c.h.b16 %v491
    %v1165 = vunpack.c.l.b16 %v492
    %v1166 = vunpack.c.h.b16 %v492
    %v1167 = vunpack.c.l.b16 %v493
    %v1168 = vunpack.c.h.b16 %v493
    %v1169 = vunpack.c.l.b16 %v494
    %v1170 = vunpack.c.l.b16 %v495
    %v1171 = vunpack.c.h.b16 %v495
    %v1172 = vunpack.c.l.b16 %v496
    %v1173 = vunpack.c.h.b16 %v496
    %v1174 = vunpack.c.l.b16 %v497
    %v1175 = vunpack.c.h.b16 %v497
    %v1176 = vunpack.c.l.b16 %v498
    %v1177 = vunpack.c.l.b16 %v499
    %v1178 = vunpack.c.h.b16 %v499
    %v1179 = vunpack.c.l.b16 %v500
    %v1180 = vunpack.c.h.b16 %v500
    %v1181 = vunpack.c.l.b16 %v501
    %v1182 = vunpack.c.h.b16 %v501
    %v1183 = vunpack.c.l.b16 %v502
    %v1184 = vunpack.c.l.b16 %v503
    %v1185 = vunpack.c.h.b16 %v503
    %v1186 = vunpack.c.l.b16 %v504
    %v1187 = vunpack.c.h.b16 %v504
    %v1188 = vunpack.c.l.b16 %v505
    %v1189 = vunpack.c.h.b16 %v505
    %v1190 = vunpack.c.l.b16 %v506
    %v1191 = vunpack.c.l.b16 %v507
    %v1192 = vunpack.c.h.b16 %v507
    %v1193 = vunpack.c.l.b16 %v508
    %v1194 = vunpack.c.h.b16 %v508
    %v1195 = vunpack.c.l.b16 %v509
    %v1196 = vunpack.c.h.b16 %v509
    %v1197 = vunpack.c.l.b16 %v510
    %v1198 = vunpack.c.l.b16 %v511
    %v1199 = vunpack.c.h.b16 %v511
    %v1200 = vunpack.c.l.b16 %v512
    %v1201 = vunpack.c.h.b16 %v512
    %v1202 = vunpack.c.l.b16 %v513
    %v1203 = vunpack.c.h.b16 %v513
    %v1204 = vunpack.c.l.b16 %v514
    %v1205 = vunpack.c.l.b16 %v515
    %v1206 = vunpack.c.h.b16 %v515
    %v1207 = vunpack.c.l.b16 %v516
    %v1208 = vunpack.c.h.b16 %v516
    %v1209 = vunpack.c.l.b16 %v517
    %v1210 = vunpack.c.h.b16 %v517
    %v1211 = vunpack.c.l.b16 %v518
    %v1212 = vunpack.c.l.b16 %v519
    %v1213 = vunpack.c.h.b16 %v519
    %v1214 = vunpack.c.l.b16 %v520
    %v1215 = vunpack.c.h.b16 %v520
    %v1216 = vunpack.c.l.b16 %v521
    %v1217 = vunpack.c.h.b16 %v521
    %v1218 = vunpack.c.l.b16 %v522
    %v1219 = vunpack.c.l.b16 %v523
    %v1220 = vunpack.c.h.b16 %v523
    %v1221 = vunpack.c.l.b16 %v524
    %v1222 = vunpack.c.h.b16 %v524
    %v1223 = vunpack.c.l.b16 %v525
    %v1224 = vunpack.c.h.b16 %v525
    %v1225 = vunpack.c.l.b16 %v526
    %v1226 = vunpack.c.l.b16 %v527
    %v1227 = vunpack.c.h.b16 %v527
    %v1228 = vunpack.c.l.b16 %v528
    %v1229 = vunpack.c.h.b16 %v528
    %v1230 = vunpack.c.l.b16 %v529
    %v1231 = vunpack.c.h.b16 %v529
    %v1232 = vunpack.c.l.b16 %v530
    %v1233 = vunpack.c.l.b16 %v531
    %v1234 = vunpack.c.h.b16 %v531
    %v1235 = vunpack.c.l.b16 %v532
    %v1236 = vunpack.c.h.b16 %v532
    %v1237 = vunpack.c.l.b16 %v533
    %v1238 = vunpack.c.h.b16 %v533
    %v1239 = vunpack.c.l.b16 %v534
    %v1240 = vunpack.c.l.b16 %v535
    %v1241 = vunpack.c.h.b16 %v535
    %v1242 = vunpack.c.l.b16 %v536
    %v1243 = vunpack.c.h.b16 %v536
    %v1244 = vunpack.c.l.b16 %v537
    %v1245 = vunpack.c.h.b16 %v537
    %v1246 = vunpack.c.l.b16 %v538
    %v1247 = vunpack.c.l.b16 %v539
    %v1248 = vunpack.c.h.b16 %v539
    %v1249 = vunpack.c.l.b16 %v540
    %v1250 = vunpack.c.h.b16 %v540
    %v1251 = vunpack.c.l.b16 %v541
    %v1252 = vunpack.c.h.b16 %v541
    %v1253 = vunpack.c.l.b16 %v542
    %v1254 = vunpack.c.l.b16 %v543
    %v1255 = vunpack.c.h.b16 %v543
    %v1256 = vunpack.c.l.b16 %v544
    %v1257 = vunpack.c.h.b16 %v544
    %v1258 = vunpack.c.l.b16 %v545
    %v1259 = vunpack.c.h.b16 %v545
    %v1260 = vunpack.c.l.b16 %v546
    %v1261 = vunpack.c.l.b16 %v547
    %v1262 = vunpack.c.h.b16 %v547
    %v1263 = vunpack.c.l.b16 %v548
    %v1264 = vunpack.c.h.b16 %v548
    %v1265 = vunpack.c.l.b16 %v549
    %v1266 = vunpack.c.h.b16 %v549
    %v1267 = vunpack.c.l.b16 %v550
    %v1268 = vunpack.c.l.b16 %v551
    %v1269 = vunpack.c.h.b16 %v551
    %v1270 = vunpack.c.l.b16 %v552
    %v1271 = vunpack.c.h.b16 %v552
    %v1272 = vunpack.c.l.b16 %v553
    %v1273 = vunpack.c.h.b16 %v553
    %v1274 = vunpack.c.l.b16 %v554
    %v1275 = vpack.c.b16 %v834, %v827
    %v1276 = vpack.c.b16 %v835, %v828
    %v1277 = vpack.c.b16 %v836, %v829
    %v1278 = vpack.c.b16 %v837, %v830
    %v1279 = vpack.c.b16 %v838, %v831
    %v1280 = vpack.c.b16 %v839, %v832
    %v1281 = vpack.c.b16 %v840, %v833
    %v1282 = vpack.c.b16 %v848, %v841
    %v1283 = vpack.c.b16 %v849, %v842
    %v1284 = vpack.c.b16 %v850, %v843
    %v1285 = vpack.c.b16 %v851, %v844
    %v1286 = vpack.c.b16 %v852, %v845
    %v1287 = vpack.c.b16 %v853, %v846
    %v1288 = vpack.c.b16 %v854, %v847
    %v1289 = vpack.c.b16 %v862, %v855
    %v1290 = vpack.c.b16 %v863, %v856
    %v1291 = vpack.c.b16 %v864, %v857
    %v1292 = vpack.c.b16 %v865, %v858
    %v1293 = vpack.c.b16 %v866, %v859
    %v1294 = vpack.c.b16 %v867, %v860
    %v1295 = vpack.c.b16 %v868, %v861
    %v1296 = vpack.c.b16 %v876, %v869
    %v1297 = vpack.c.b16 %v877, %v870
    %v1298 = vpack.c.b16 %v878, %v871
    %v1299 = vpack.c.b16 %v879, %v872
    %v1300 = vpack.c.b16 %v880, %v873
    %v1301 = vpack.c.b16 %v881, %v874
    %v1302 = vpack.c.b16 %v882, %v875
    %v1303 = vpack.c.b16 %v890, %v883
    %v1304 = vpack.c.b16 %v891, %v884
    %v1305 = vpack.c.b16 %v892, %v885
    %v1306 = vpack.c.b16 %v893, %v886
    %v1307 = vpack.c.b16 %v894, %v887
    %v1308 = vpack.c.b16 %v895, %v888
    %v1309 = vpack.c.b16 %v896, %v889
    %v1310 = vpack.c.b16 %v904, %v897
    %v1311 = vpack.c.b16 %v905, %v898
    %v1312 = vpack.c.b16 %v906, %v899
    %v1313 = vpack.c.b16 %v907, %v900
    %v1314 = vpack.c.b16 %v908, %v901
    %v1315 = vpack.c.b16 %v909, %v902
    %v1316 = vpack.c.b16 %v910, %v903
    %v1317 = vpack.c.b16 %v918, %v911
    %v1318 = vpack.c.b16 %v919, %v912
    %v1319 = vpack.c.b16 %v920, %v913
    %v1320 = vpack.c.b16 %v921, %v914
    %v1321 = vpack.c.b16 %v922, %v915
    %v1322 = vpack.c.b16 %v923, %v916
    %v1323 = vpack.c.b16 %v924, %v917
    %v1324 = vpack.c.b16 %v932, %v925
    %v1325 = vpack.c.b16 %v933, %v926
    %v1326 = vpack.c.b16 %v934, %v927
    %v1327 = vpack.c.b16 %v935, %v928
    %v1328 = vpack.c.b16 %v936, %v929
    %v1329 = vpack.c.b16 %v937, %v930
    %v1330 = vpack.c.b16 %v938, %v931
    %v1331 = vpack.c.b16 %v946, %v939
    %v1332 = vpack.c.b16 %v947, %v940
    %v1333 = vpack.c.b16 %v948, %v941
    %v1334 = vpack.c.b16 %v949, %v942
    %v1335 = vpack.c.b16 %v950, %v943
    %v1336 = vpack.c.b16 %v951, %v944
    %v1337 = vpack.c.b16 %v952, %v945
    %v1338 = vpack.c.b16 %v960, %v953
    %v1339 = vpack.c.b16 %v961, %v954
    %v1340 = vpack.c.b16 %v962, %v955
    %v1341 = vpack.c.b16 %v963, %v956
    %v1342 = vpack.c.b16 %v964, %v957
    %v1343 = vpack.c.b16 %v965, %v958
    %v1344 = vpack.c.b16 %v966, %v959
    %v1345 = vpack.c.b16 %v974, %v967
    %v1346 = vpack.c.b16 %v975, %v968
    %v1347 = vpack.c.b16 %v976, %v969
    %v1348 = vpack.c.b16 %v977, %v970
    %v1349 = vpack.c.b16 %v978, %v971
    %v1350 = vpack.c.b16 %v979, %v972
    %v1351 = vpack.c.b16 %v980, %v973
    %v1352 = vpack.c.b16 %v988, %v981
    %v1353 = vpack.c.b16 %v989, %v982
    %v1354 = vpack.c.b16 %v990, %v983
    %v1355 = vpack.c.b16 %v991, %v984
    %v1356 = vpack.c.b16 %v992, %v985
    %v1357 = vpack.c.b16 %v993, %v986
    %v1358 = vpack.c.b16 %v994, %v987
    %v1359 = vpack.c.b16 %v1002, %v995
    %v1360 = vpack.c.b16 %v1003, %v996
    %v1361 = vpack.c.b16 %v1004, %v997
    %v1362 = vpack.c.b16 %v1005, %v998
    %v1363 = vpack.c.b16 %v1006, %v999
    %v1364 = vpack.c.b16 %v1007, %v1000
    %v1365 = vpack.c.b16 %v1008, %v1001
    %v1366 = vpack.c.b16 %v1016, %v1009
    %v1367 = vpack.c.b16 %v1017, %v1010
    %v1368 = vpack.c.b16 %v1018, %v1011
    %v1369 = vpack.c.b16 %v1019, %v1012
    %v1370 = vpack.c.b16 %v1020, %v1013
    %v1371 = vpack.c.b16 %v1021, %v1014
    %v1372 = vpack.c.b16 %v1022, %v1015
    %v1373 = vpack.c.b16 %v1030, %v1023
    %v1374 = vpack.c.b16 %v1031, %v1024
    %v1375 = vpack.c.b16 %v1032, %v1025
    %v1376 = vpack.c.b16 %v1033, %v1026
    %v1377 = vpack.c.b16 %v1034, %v1027
    %v1378 = vpack.c.b16 %v1035, %v1028
    %v1379 = vpack.c.b16 %v1036, %v1029
    %v1380 = vpack.c.b16 %v1044, %v1037
    %v1381 = vpack.c.b16 %v1045, %v1038
    %v1382 = vpack.c.b16 %v1046, %v1039
    %v1383 = vpack.c.b16 %v1047, %v1040
    %v1384 = vpack.c.b16 %v1048, %v1041
    %v1385 = vpack.c.b16 %v1049, %v1042
    %v1386 = vpack.c.b16 %v1050, %v1043
    %v1387 = vpack.c.b16 %v1058, %v1051
    %v1388 = vpack.c.b16 %v1059, %v1052
    %v1389 = vpack.c.b16 %v1060, %v1053
    %v1390 = vpack.c.b16 %v1061, %v1054
    %v1391 = vpack.c.b16 %v1062, %v1055
    %v1392 = vpack.c.b16 %v1063, %v1056
    %v1393 = vpack.c.b16 %v1064, %v1057
    %v1394 = vpack.c.b16 %v1072, %v1065
    %v1395 = vpack.c.b16 %v1073, %v1066
    %v1396 = vpack.c.b16 %v1074, %v1067
    %v1397 = vpack.c.b16 %v1075, %v1068
    %v1398 = vpack.c.b16 %v1076, %v1069
    %v1399 = vpack.c.b16 %v1077, %v1070
    %v1400 = vpack.c.b16 %v1078, %v1071
    %v1401 = vpack.c.b16 %v1086, %v1079
    %v1402 = vpack.c.b16 %v1087, %v1080
    %v1403 = vpack.c.b16 %v1088, %v1081
    %v1404 = vpack.c.b16 %v1089, %v1082
    %v1405 = vpack.c.b16 %v1090, %v1083
    %v1406 = vpack.c.b16 %v1091, %v1084
    %v1407 = vpack.c.b16 %v1092, %v1085
    %v1408 = vpack.c.b16 %v1100, %v1093
    %v1409 = vpack.c.b16 %v1101, %v1094
    %v1410 = vpack.c.b16 %v1102, %v1095
    %v1411 = vpack.c.b16 %v1103, %v1096
    %v1412 = vpack.c.b16 %v1104, %v1097
    %v1413 = vpack.c.b16 %v1105, %v1098
    %v1414 = vpack.c.b16 %v1106, %v1099
    %v1415 = vpack.c.b16 %v1114, %v1107
    %v1416 = vpack.c.b16 %v1115, %v1108
    %v1417 = vpack.c.b16 %v1116, %v1109
    %v1418 = vpack.c.b16 %v1117, %v1110
    %v1419 = vpack.c.b16 %v1118, %v1111
    %v1420 = vpack.c.b16 %v1119, %v1112
    %v1421 = vpack.c.b16 %v1120, %v1113
    %v1422 = vpack.c.b16 %v1128, %v1121
    %v1423 = vpack.c.b16 %v1129, %v1122
    %v1424 = vpack.c.b16 %v1130, %v1123
    %v1425 = vpack.c.b16 %v1131, %v1124
    %v1426 = vpack.c.b16 %v1132, %v1125
    %v1427 = vpack.c.b16 %v1133, %v1126
    %v1428 = vpack.c.b16 %v1134, %v1127
    %v1429 = vpack.c.b16 %v1142, %v1135
    %v1430 = vpack.c.b16 %v1143, %v1136
    %v1431 = vpack.c.b16 %v1144, %v1137
    %v1432 = vpack.c.b16 %v1145, %v1138
    %v1433 = vpack.c.b16 %v1146, %v1139
    %v1434 = vpack.c.b16 %v1147, %v1140
    %v1435 = vpack.c.b16 %v1148, %v1141
    %v1436 = vpack.c.b16 %v1156, %v1149
    %v1437 = vpack.c.b16 %v1157, %v1150
    %v1438 = vpack.c.b16 %v1158, %v1151
    %v1439 = vpack.c.b16 %v1159, %v1152
    %v1440 = vpack.c.b16 %v1160, %v1153
    %v1441 = vpack.c.b16 %v1161, %v1154
    %v1442 = vpack.c.b16 %v1162, %v1155
    %v1443 = vpack.c.b16 %v1170, %v1163
    %v1444 = vpack.c.b16 %v1171, %v1164
    %v1445 = vpack.c.b16 %v1172, %v1165
    %v1446 = vpack.c.b16 %v1173, %v1166
    %v1447 = vpack.c.b16 %v1174, %v1167
    %v1448 = vpack.c.b16 %v1175, %v1168
    %v1449 = vpack.c.b16 %v1176, %v1169
    %v1450 = vpack.c.b16 %v1184, %v1177
    %v1451 = vpack.c.b16 %v1185, %v1178
    %v1452 = vpack.c.b16 %v1186, %v1179
    %v1453 = vpack.c.b16 %v1187, %v1180
    %v1454 = vpack.c.b16 %v1188, %v1181
    %v1455 = vpack.c.b16 %v1189, %v1182
    %v1456 = vpack.c.b16 %v1190, %v1183
    %v1457 = vpack.c.b16 %v1198, %v1191
    %v1458 = vpack.c.b16 %v1199, %v1192
    %v1459 = vpack.c.b16 %v1200, %v1193
    %v1460 = vpack.c.b16 %v1201, %v1194
    %v1461 = vpack.c.b16 %v1202, %v1195
    %v1462 = vpack.c.b16 %v1203, %v1196
    %v1463 = vpack.c.b16 %v1204, %v1197
    %v1464 = vpack.c.b16 %v1212, %v1205
    %v1465 = vpack.c.b16 %v1213, %v1206
    %v1466 = vpack.c.b16 %v1214, %v1207
    %v1467 = vpack.c.b16 %v1215, %v1208
    %v1468 = vpack.c.b16 %v1216, %v1209
    %v1469 = vpack.c.b16 %v1217, %v1210
    %v1470 = vpack.c.b16 %v1218, %v1211
    %v1471 = vpack.c.b16 %v1226, %v1219
    %v1472 = vpack.c.b16 %v1227, %v1220
    %v1473 = vpack.c.b16 %v1228, %v1221
    %v1474 = vpack.c.b16 %v1229, %v1222
    %v1475 = vpack.c.b16 %v1230, %v1223
    %v1476 = vpack.c.b16 %v1231, %v1224
    %v1477 = vpack.c.b16 %v1232, %v1225
    %v1478 = vpack.c.b16 %v1240, %v1233
    %v1479 = vpack.c.b16 %v1241, %v1234
    %v1480 = vpack.c.b16 %v1242, %v1235
    %v1481 = vpack.c.b16 %v1243, %v1236
    %v1482 = vpack.c.b16 %v1244, %v1237
    %v1483 = vpack.c.b16 %v1245, %v1238
    %v1484 = vpack.c.b16 %v1246, %v1239
    %v1485 = vpack.c.b16 %v1254, %v1247
    %v1486 = vpack.c.b16 %v1255, %v1248
    %v1487 = vpack.c.b16 %v1256, %v1249
    %v1488 = vpack.c.b16 %v1257, %v1250
    %v1489 = vpack.c.b16 %v1258, %v1251
    %v1490 = vpack.c.b16 %v1259, %v1252
    %v1491 = vpack.c.b16 %v1260, %v1253
    %v1492 = vpack.c.b16 %v1268, %v1261
    %v1493 = vpack.c.b16 %v1269, %v1262
    %v1494 = vpack.c.b16 %v1270, %v1263
    %v1495 = vpack.c.b16 %v1271, %v1264
    %v1496 = vpack.c.b16 %v1272, %v1265
    %v1497 = vpack.c.b16 %v1273, %v1266
    %v1498 = vpack.c.b16 %v1274, %v1267
    %1723 = vmatpush.bf16.msra.mxu0 %v1324
    %1724 = vmatpush.bf16.msra.mxu0 %v1317
    %1725 = vmatpush.bf16.msra.mxu0 %v1310
    %1726 = vmatpush.bf16.msra.mxu0 %v1303
    %1727 = vmatpush.bf16.msra.mxu0 %v1296
    %1728 = vmatpush.bf16.msra.mxu0 %v1289
    %1729 = vmatpush.bf16.msra.mxu0 %v1282
    %1730 = vmatpush.bf16.msra.mxu0 %v1275
    %1731 = vmatmul.bf16.gmra.mxu0 %v295
    %v1732 = vpop.f32.mrf.mxu0
    %v1733 = vadd.f32 %v557, %v1732
    %v1734 = vpop.f32.mrf.mxu0
    %v1735 = vadd.f32 %v557, %v1734
    %1736 = vdwg.mxu0
    %1737 = vmatpush.bf16.msra.mxu0 %v1380
    %1738 = vmatpush.bf16.msra.mxu0 %v1373
    %1739 = vmatpush.bf16.msra.mxu0 %v1366
    %1740 = vmatpush.bf16.msra.mxu0 %v1359
    %1741 = vmatpush.bf16.msra.mxu0 %v1352
    %1742 = vmatpush.bf16.msra.mxu0 %v1345
    %1743 = vmatpush.bf16.msra.mxu0 %v1338
    %1744 = vmatpush.bf16.msra.mxu0 %v1331
    %1745 = vmatmul.bf16.gmra.mxu0 %v296
    %v1746 = vpop.f32.mrf.mxu0
    %v1747 = vadd.f32 %v1733, %v1746
    %v1748 = vpop.f32.mrf.mxu0
    %v1749 = vadd.f32 %v1735, %v1748
    %1750 = vdwg.mxu0
    %1751 = vmatpush.bf16.msra.mxu0 %v1436
    %1752 = vmatpush.bf16.msra.mxu0 %v1429
    %1753 = vmatpush.bf16.msra.mxu0 %v1422
    %1754 = vmatpush.bf16.msra.mxu0 %v1415
    %1755 = vmatpush.bf16.msra.mxu0 %v1408
    %1756 = vmatpush.bf16.msra.mxu0 %v1401
    %1757 = vmatpush.bf16.msra.mxu0 %v1394
    %1758 = vmatpush.bf16.msra.mxu0 %v1387
    %1759 = vmatmul.bf16.gmra.mxu0 %v297
    %v1760 = vpop.f32.mrf.mxu0
    %v1761 = vadd.f32 %v1747, %v1760
    %v1762 = vpop.f32.mrf.mxu0
    %v1763 = vadd.f32 %v1749, %v1762
    %1764 = vdwg.mxu0
    %1765 = vmatpush.bf16.msra.mxu0 %v1492
    %1766 = vmatpush.bf16.msra.mxu0 %v1485
    %1767 = vmatpush.bf16.msra.mxu0 %v1478
    %1768 = vmatpush.bf16.msra.mxu0 %v1471
    %1769 = vmatpush.bf16.msra.mxu0 %v1464
    %1770 = vmatpush.bf16.msra.mxu0 %v1457
    %1771 = vmatpush.bf16.msra.mxu0 %v1450
    %1772 = vmatpush.bf16.msra.mxu0 %v1443
    %1773 = vmatmul.bf16.gmra.mxu0 %v298
    %v1774 = vpop.f32.mrf.mxu0
    %v1775 = vadd.f32 %v1761, %v1774
    %v1776 = vpop.f32.mrf.mxu0
    %v1777 = vadd.f32 %v1763, %v1776
    %1778 = vdwg.mxu0
    %1779 = vmatpush.bf16.msra.mxu0 %v1325
    %1780 = vmatpush.bf16.msra.mxu0 %v1318
    %1781 = vmatpush.bf16.msra.mxu0 %v1311
    %1782 = vmatpush.bf16.msra.mxu0 %v1304
    %1783 = vmatpush.bf16.msra.mxu0 %v1297
    %1784 = vmatpush.bf16.msra.mxu0 %v1290
    %1785 = vmatpush.bf16.msra.mxu0 %v1283
    %1786 = vmatpush.bf16.msra.mxu0 %v1276
    %1787 = vmatmul.bf16.gmra.mxu0 %v295
    %v1788 = vpop.f32.mrf.mxu0
    %v1789 = vadd.f32 %v558, %v1788
    %v1790 = vpop.f32.mrf.mxu0
    %v1791 = vadd.f32 %v558, %v1790
    %1792 = vdwg.mxu0
    %1793 = vmatpush.bf16.msra.mxu0 %v1381
    %1794 = vmatpush.bf16.msra.mxu0 %v1374
    %1795 = vmatpush.bf16.msra.mxu0 %v1367
    %1796 = vmatpush.bf16.msra.mxu0 %v1360
    %1797 = vmatpush.bf16.msra.mxu0 %v1353
    %1798 = vmatpush.bf16.msra.mxu0 %v1346
    %1799 = vmatpush.bf16.msra.mxu0 %v1339
    %1800 = vmatpush.bf16.msra.mxu0 %v1332
    %1801 = vmatmul.bf16.gmra.mxu0 %v296
    %v1802 = vpop.f32.mrf.mxu0
    %v1803 = vadd.f32 %v1789, %v1802
    %v1804 = vpop.f32.mrf.mxu0
    %v1805 = vadd.f32 %v1791, %v1804
    %1806 = vdwg.mxu0
    %1807 = vmatpush.bf16.msra.mxu0 %v1437
    %1808 = vmatpush.bf16.msra.mxu0 %v1430
    %1809 = vmatpush.bf16.msra.mxu0 %v1423
    %1810 = vmatpush.bf16.msra.mxu0 %v1416
    %1811 = vmatpush.bf16.msra.mxu0 %v1409
    %1812 = vmatpush.bf16.msra.mxu0 %v1402
    %1813 = vmatpush.bf16.msra.mxu0 %v1395
    %1814 = vmatpush.bf16.msra.mxu0 %v1388
    %1815 = vmatmul.bf16.gmra.mxu0 %v297
    %v1816 = vpop.f32.mrf.mxu0
    %v1817 = vadd.f32 %v1803, %v1816
    %v1818 = vpop.f32.mrf.mxu0
    %v1819 = vadd.f32 %v1805, %v1818
    %1820 = vdwg.mxu0
    %1821 = vmatpush.bf16.msra.mxu0 %v1493
    %1822 = vmatpush.bf16.msra.mxu0 %v1486
    %1823 = vmatpush.bf16.msra.mxu0 %v1479
    %1824 = vmatpush.bf16.msra.mxu0 %v1472
    %1825 = vmatpush.bf16.msra.mxu0 %v1465
    %1826 = vmatpush.bf16.msra.mxu0 %v1458
    %1827 = vmatpush.bf16.msra.mxu0 %v1451
    %1828 = vmatpush.bf16.msra.mxu0 %v1444
    %1829 = vmatmul.bf16.gmra.mxu0 %v298
    %v1830 = vpop.f32.mrf.mxu0
    %v1831 = vadd.f32 %v1817, %v1830
    %v1832 = vpop.f32.mrf.mxu0
    %v1833 = vadd.f32 %v1819, %v1832
    %1834 = vdwg.mxu0
    %1835 = vmatpush.bf16.msra.mxu0 %v1326
    %1836 = vmatpush.bf16.msra.mxu0 %v1319
    %1837 = vmatpush.bf16.msra.mxu0 %v1312
    %1838 = vmatpush.bf16.msra.mxu0 %v1305
    %1839 = vmatpush.bf16.msra.mxu0 %v1298
    %1840 = vmatpush.bf16.msra.mxu0 %v1291
    %1841 = vmatpush.bf16.msra.mxu0 %v1284
    %1842 = vmatpush.bf16.msra.mxu0 %v1277
    %1843 = vmatmul.bf16.gmra.mxu0 %v295
    %v1844 = vpop.f32.mrf.mxu0
    %v1845 = vadd.f32 %v559, %v1844
    %v1846 = vpop.f32.mrf.mxu0
    %v1847 = vadd.f32 %v559, %v1846
    %1848 = vdwg.mxu0
    %1849 = vmatpush.bf16.msra.mxu0 %v1382
    %1850 = vmatpush.bf16.msra.mxu0 %v1375
    %1851 = vmatpush.bf16.msra.mxu0 %v1368
    %1852 = vmatpush.bf16.msra.mxu0 %v1361
    %1853 = vmatpush.bf16.msra.mxu0 %v1354
    %1854 = vmatpush.bf16.msra.mxu0 %v1347
    %1855 = vmatpush.bf16.msra.mxu0 %v1340
    %1856 = vmatpush.bf16.msra.mxu0 %v1333
    %1857 = vmatmul.bf16.gmra.mxu0 %v296
    %v1858 = vpop.f32.mrf.mxu0
    %v1859 = vadd.f32 %v1845, %v1858
    %v1860 = vpop.f32.mrf.mxu0
    %v1861 = vadd.f32 %v1847, %v1860
    %1862 = vdwg.mxu0
    %1863 = vmatpush.bf16.msra.mxu0 %v1438
    %1864 = vmatpush.bf16.msra.mxu0 %v1431
    %1865 = vmatpush.bf16.msra.mxu0 %v1424
    %1866 = vmatpush.bf16.msra.mxu0 %v1417
    %1867 = vmatpush.bf16.msra.mxu0 %v1410
    %1868 = vmatpush.bf16.msra.mxu0 %v1403
    %1869 = vmatpush.bf16.msra.mxu0 %v1396
    %1870 = vmatpush.bf16.msra.mxu0 %v1389
    %1871 = vmatmul.bf16.gmra.mxu0 %v297
    %v1872 = vpop.f32.mrf.mxu0
    %v1873 = vadd.f32 %v1859, %v1872
    %v1874 = vpop.f32.mrf.mxu0
    %v1875 = vadd.f32 %v1861, %v1874
    %1876 = vdwg.mxu0
    %1877 = vmatpush.bf16.msra.mxu0 %v1494
    %1878 = vmatpush.bf16.msra.mxu0 %v1487
    %1879 = vmatpush.bf16.msra.mxu0 %v1480
    %1880 = vmatpush.bf16.msra.mxu0 %v1473
    %1881 = vmatpush.bf16.msra.mxu0 %v1466
    %1882 = vmatpush.bf16.msra.mxu0 %v1459
    %1883 = vmatpush.bf16.msra.mxu0 %v1452
    %1884 = vmatpush.bf16.msra.mxu0 %v1445
    %1885 = vmatmul.bf16.gmra.mxu0 %v298
    %v1886 = vpop.f32.mrf.mxu0
    %v1887 = vadd.f32 %v1873, %v1886
    %v1888 = vpop.f32.mrf.mxu0
    %v1889 = vadd.f32 %v1875, %v1888
    %1890 = vdwg.mxu0
    %1891 = vmatpush.bf16.msra.mxu0 %v1327
    %1892 = vmatpush.bf16.msra.mxu0 %v1320
    %1893 = vmatpush.bf16.msra.mxu0 %v1313
    %1894 = vmatpush.bf16.msra.mxu0 %v1306
    %1895 = vmatpush.bf16.msra.mxu0 %v1299
    %1896 = vmatpush.bf16.msra.mxu0 %v1292
    %1897 = vmatpush.bf16.msra.mxu0 %v1285
    %1898 = vmatpush.bf16.msra.mxu0 %v1278
    %1899 = vmatmul.bf16.gmra.mxu0 %v295
    %v1900 = vpop.f32.mrf.mxu0
    %v1901 = vadd.f32 %v560, %v1900
    %v1902 = vpop.f32.mrf.mxu0
    %v1903 = vadd.f32 %v560, %v1902
    %1904 = vdwg.mxu0
    %1905 = vmatpush.bf16.msra.mxu0 %v1383
    %1906 = vmatpush.bf16.msra.mxu0 %v1376
    %1907 = vmatpush.bf16.msra.mxu0 %v1369
    %1908 = vmatpush.bf16.msra.mxu0 %v1362
    %1909 = vmatpush.bf16.msra.mxu0 %v1355
    %1910 = vmatpush.bf16.msra.mxu0 %v1348
    %1911 = vmatpush.bf16.msra.mxu0 %v1341
    %1912 = vmatpush.bf16.msra.mxu0 %v1334
    %1913 = vmatmul.bf16.gmra.mxu0 %v296
    %v1914 = vpop.f32.mrf.mxu0
    %v1915 = vadd.f32 %v1901, %v1914
    %v1916 = vpop.f32.mrf.mxu0
    %v1917 = vadd.f32 %v1903, %v1916
    %1918 = vdwg.mxu0
    %1919 = vmatpush.bf16.msra.mxu0 %v1439
    %1920 = vmatpush.bf16.msra.mxu0 %v1432
    %1921 = vmatpush.bf16.msra.mxu0 %v1425
    %1922 = vmatpush.bf16.msra.mxu0 %v1418
    %1923 = vmatpush.bf16.msra.mxu0 %v1411
    %1924 = vmatpush.bf16.msra.mxu0 %v1404
    %1925 = vmatpush.bf16.msra.mxu0 %v1397
    %1926 = vmatpush.bf16.msra.mxu0 %v1390
    %1927 = vmatmul.bf16.gmra.mxu0 %v297
    %v1928 = vpop.f32.mrf.mxu0
    %v1929 = vadd.f32 %v1915, %v1928
    %v1930 = vpop.f32.mrf.mxu0
    %v1931 = vadd.f32 %v1917, %v1930
    %1932 = vdwg.mxu0
    %1933 = vmatpush.bf16.msra.mxu0 %v1495
    %1934 = vmatpush.bf16.msra.mxu0 %v1488
    %1935 = vmatpush.bf16.msra.mxu0 %v1481
    %1936 = vmatpush.bf16.msra.mxu0 %v1474
    %1937 = vmatpush.bf16.msra.mxu0 %v1467
    %1938 = vmatpush.bf16.msra.mxu0 %v1460
    %1939 = vmatpush.bf16.msra.mxu0 %v1453
    %1940 = vmatpush.bf16.msra.mxu0 %v1446
    %1941 = vmatmul.bf16.gmra.mxu0 %v298
    %v1942 = vpop.f32.mrf.mxu0
    %v1943 = vadd.f32 %v1929, %v1942
    %v1944 = vpop.f32.mrf.mxu0
    %v1945 = vadd.f32 %v1931, %v1944
    %1946 = vdwg.mxu0
    %1947 = vmatpush.bf16.msra.mxu0 %v1328
    %1948 = vmatpush.bf16.msra.mxu0 %v1321
    %1949 = vmatpush.bf16.msra.mxu0 %v1314
    %1950 = vmatpush.bf16.msra.mxu0 %v1307
    %1951 = vmatpush.bf16.msra.mxu0 %v1300
    %1952 = vmatpush.bf16.msra.mxu0 %v1293
    %1953 = vmatpush.bf16.msra.mxu0 %v1286
    %1954 = vmatpush.bf16.msra.mxu0 %v1279
    %1955 = vmatmul.bf16.gmra.mxu0 %v295
    %v1956 = vpop.f32.mrf.mxu0
    %v1957 = vadd.f32 %v561, %v1956
    %v1958 = vpop.f32.mrf.mxu0
    %v1959 = vadd.f32 %v561, %v1958
    %1960 = vdwg.mxu0
    %1961 = vmatpush.bf16.msra.mxu0 %v1384
    %1962 = vmatpush.bf16.msra.mxu0 %v1377
    %1963 = vmatpush.bf16.msra.mxu0 %v1370
    %1964 = vmatpush.bf16.msra.mxu0 %v1363
    %1965 = vmatpush.bf16.msra.mxu0 %v1356
    %1966 = vmatpush.bf16.msra.mxu0 %v1349
    %1967 = vmatpush.bf16.msra.mxu0 %v1342
    %1968 = vmatpush.bf16.msra.mxu0 %v1335
    %1969 = vmatmul.bf16.gmra.mxu0 %v296
    %v1970 = vpop.f32.mrf.mxu0
    %v1971 = vadd.f32 %v1957, %v1970
    %v1972 = vpop.f32.mrf.mxu0
    %v1973 = vadd.f32 %v1959, %v1972
    %1974 = vdwg.mxu0
    %1975 = vmatpush.bf16.msra.mxu0 %v1440
    %1976 = vmatpush.bf16.msra.mxu0 %v1433
    %1977 = vmatpush.bf16.msra.mxu0 %v1426
    %1978 = vmatpush.bf16.msra.mxu0 %v1419
    %1979 = vmatpush.bf16.msra.mxu0 %v1412
    %1980 = vmatpush.bf16.msra.mxu0 %v1405
    %1981 = vmatpush.bf16.msra.mxu0 %v1398
    %1982 = vmatpush.bf16.msra.mxu0 %v1391
    %1983 = vmatmul.bf16.gmra.mxu0 %v297
    %v1984 = vpop.f32.mrf.mxu0
    %v1985 = vadd.f32 %v1971, %v1984
    %v1986 = vpop.f32.mrf.mxu0
    %v1987 = vadd.f32 %v1973, %v1986
    %1988 = vdwg.mxu0
    %1989 = vmatpush.bf16.msra.mxu0 %v1496
    %1990 = vmatpush.bf16.msra.mxu0 %v1489
    %1991 = vmatpush.bf16.msra.mxu0 %v1482
    %1992 = vmatpush.bf16.msra.mxu0 %v1475
    %1993 = vmatpush.bf16.msra.mxu0 %v1468
    %1994 = vmatpush.bf16.msra.mxu0 %v1461
    %1995 = vmatpush.bf16.msra.mxu0 %v1454
    %1996 = vmatpush.bf16.msra.mxu0 %v1447
    %1997 = vmatmul.bf16.gmra.mxu0 %v298
    %v1998 = vpop.f32.mrf.mxu0
    %v1999 = vadd.f32 %v1985, %v1998
    %v2000 = vpop.f32.mrf.mxu0
    %v2001 = vadd.f32 %v1987, %v2000
    %2002 = vdwg.mxu0
    %2003 = vmatpush.bf16.msra.mxu0 %v1329
    %2004 = vmatpush.bf16.msra.mxu0 %v1322
    %2005 = vmatpush.bf16.msra.mxu0 %v1315
    %2006 = vmatpush.bf16.msra.mxu0 %v1308
    %2007 = vmatpush.bf16.msra.mxu0 %v1301
    %2008 = vmatpush.bf16.msra.mxu0 %v1294
    %2009 = vmatpush.bf16.msra.mxu0 %v1287
    %2010 = vmatpush.bf16.msra.mxu0 %v1280
    %2011 = vmatmul.bf16.gmra.mxu0 %v295
    %v2012 = vpop.f32.mrf.mxu0
    %v2013 = vadd.f32 %v562, %v2012
    %v2014 = vpop.f32.mrf.mxu0
    %v2015 = vadd.f32 %v562, %v2014
    %2016 = vdwg.mxu0
    %2017 = vmatpush.bf16.msra.mxu0 %v1385
    %2018 = vmatpush.bf16.msra.mxu0 %v1378
    %2019 = vmatpush.bf16.msra.mxu0 %v1371
    %2020 = vmatpush.bf16.msra.mxu0 %v1364
    %2021 = vmatpush.bf16.msra.mxu0 %v1357
    %2022 = vmatpush.bf16.msra.mxu0 %v1350
    %2023 = vmatpush.bf16.msra.mxu0 %v1343
    %2024 = vmatpush.bf16.msra.mxu0 %v1336
    %2025 = vmatmul.bf16.gmra.mxu0 %v296
    %v2026 = vpop.f32.mrf.mxu0
    %v2027 = vadd.f32 %v2013, %v2026
    %v2028 = vpop.f32.mrf.mxu0
    %v2029 = vadd.f32 %v2015, %v2028
    %2030 = vdwg.mxu0
    %2031 = vmatpush.bf16.msra.mxu0 %v1441
    %2032 = vmatpush.bf16.msra.mxu0 %v1434
    %2033 = vmatpush.bf16.msra.mxu0 %v1427
    %2034 = vmatpush.bf16.msra.mxu0 %v1420
    %2035 = vmatpush.bf16.msra.mxu0 %v1413
    %2036 = vmatpush.bf16.msra.mxu0 %v1406
    %2037 = vmatpush.bf16.msra.mxu0 %v1399
    %2038 = vmatpush.bf16.msra.mxu0 %v1392
    %2039 = vmatmul.bf16.gmra.mxu0 %v297
    %v2040 = vpop.f32.mrf.mxu0
    %v2041 = vadd.f32 %v2027, %v2040
    %v2042 = vpop.f32.mrf.mxu0
    %v2043 = vadd.f32 %v2029, %v2042
    %2044 = vdwg.mxu0
    %2045 = vmatpush.bf16.msra.mxu0 %v1497
    %2046 = vmatpush.bf16.msra.mxu0 %v1490
    %2047 = vmatpush.bf16.msra.mxu0 %v1483
    %2048 = vmatpush.bf16.msra.mxu0 %v1476
    %2049 = vmatpush.bf16.msra.mxu0 %v1469
    %2050 = vmatpush.bf16.msra.mxu0 %v1462
    %2051 = vmatpush.bf16.msra.mxu0 %v1455
    %2052 = vmatpush.bf16.msra.mxu0 %v1448
    %2053 = vmatmul.bf16.gmra.mxu0 %v298
    %v2054 = vpop.f32.mrf.mxu0
    %v2055 = vadd.f32 %v2041, %v2054
    %v2056 = vpop.f32.mrf.mxu0
    %v2057 = vadd.f32 %v2043, %v2056
    %2058 = vdwg.mxu0
    %2059 = vmatpush.bf16.msra.mxu0 %v1330
    %2060 = vmatpush.bf16.msra.mxu0 %v1323
    %2061 = vmatpush.bf16.msra.mxu0 %v1316
    %2062 = vmatpush.bf16.msra.mxu0 %v1309
    %2063 = vmatpush.bf16.msra.mxu0 %v1302
    %2064 = vmatpush.bf16.msra.mxu0 %v1295
    %2065 = vmatpush.bf16.msra.mxu0 %v1288
    %2066 = vmatpush.bf16.msra.mxu0 %v1281
    %2067 = vmatmul.bf16.gmra.mxu0 %v295
    %v2068 = vpop.f32.mrf.mxu0
    %v2069 = vadd.f32 %v563, %v2068
    %v2070 = vpop.f32.mrf.mxu0
    %v2071 = vadd.f32 %v563, %v2070
    %2072 = vdwg.mxu0
    %2073 = vmatpush.bf16.msra.mxu0 %v1386
    %2074 = vmatpush.bf16.msra.mxu0 %v1379
    %2075 = vmatpush.bf16.msra.mxu0 %v1372
    %2076 = vmatpush.bf16.msra.mxu0 %v1365
    %2077 = vmatpush.bf16.msra.mxu0 %v1358
    %2078 = vmatpush.bf16.msra.mxu0 %v1351
    %2079 = vmatpush.bf16.msra.mxu0 %v1344
    %2080 = vmatpush.bf16.msra.mxu0 %v1337
    %2081 = vmatmul.bf16.gmra.mxu0 %v296
    %v2082 = vpop.f32.mrf.mxu0
    %v2083 = vadd.f32 %v2069, %v2082
    %v2084 = vpop.f32.mrf.mxu0
    %v2085 = vadd.f32 %v2071, %v2084
    %2086 = vdwg.mxu0
    %2087 = vmatpush.bf16.msra.mxu0 %v1442
    %2088 = vmatpush.bf16.msra.mxu0 %v1435
    %2089 = vmatpush.bf16.msra.mxu0 %v1428
    %2090 = vmatpush.bf16.msra.mxu0 %v1421
    %2091 = vmatpush.bf16.msra.mxu0 %v1414
    %2092 = vmatpush.bf16.msra.mxu0 %v1407
    %2093 = vmatpush.bf16.msra.mxu0 %v1400
    %2094 = vmatpush.bf16.msra.mxu0 %v1393
    %2095 = vmatmul.bf16.gmra.mxu0 %v297
    %v2096 = vpop.f32.mrf.mxu0
    %v2097 = vadd.f32 %v2083, %v2096
    %v2098 = vpop.f32.mrf.mxu0
    %v2099 = vadd.f32 %v2085, %v2098
    %2100 = vdwg.mxu0
    %2101 = vmatpush.bf16.msra.mxu0 %v1498
    %2102 = vmatpush.bf16.msra.mxu0 %v1491
    %2103 = vmatpush.bf16.msra.mxu0 %v1484
    %2104 = vmatpush.bf16.msra.mxu0 %v1477
    %2105 = vmatpush.bf16.msra.mxu0 %v1470
    %2106 = vmatpush.bf16.msra.mxu0 %v1463
    %2107 = vmatpush.bf16.msra.mxu0 %v1456
    %2108 = vmatpush.bf16.msra.mxu0 %v1449
    %2109 = vmatmul.bf16.gmra.mxu0 %v298
    %v2110 = vpop.f32.mrf.mxu0
    %v2111 = vadd.f32 %v2097, %v2110
    %v2112 = vpop.f32.mrf.mxu0
    %v2113 = vadd.f32 %v2099, %v2112
    %2114 = vdwg.mxu0
    %v2115 = vxor.u32 %v1775, 2147483648
    %v2116 = vxor.u32 %v1831, 2147483648
    %v2117 = vxor.u32 %v1887, 2147483648
    %v2118 = vxor.u32 %v1943, 2147483648
    %v2119 = vxor.u32 %v1999, 2147483648
    %v2120 = vxor.u32 %v2055, 2147483648
    %v2121 = vxor.u32 %v2111, 2147483648
    %v2122 = vxor.u32 %v1777, 2147483648
    %v2123 = vxor.u32 %v1833, 2147483648
    %v2124 = vxor.u32 %v1889, 2147483648
    %v2125 = vxor.u32 %v1945, 2147483648
    %v2126 = vxor.u32 %v2001, 2147483648
    %v2127 = vxor.u32 %v2057, 2147483648
    %v2128 = vxor.u32 %v2113, 2147483648
    %v2129 = vmul.f32 %v2115, 1.442695
    %v2130 = vpow.pop %v2129
    %v2131 = vmul.f32 %v2116, 1.442695
    %v2132 = vpow.pop %v2131
    %v2133 = vmul.f32 %v2117, 1.442695
    %v2134 = vpow.pop %v2133
    %v2135 = vmul.f32 %v2118, 1.442695
    %v2136 = vpow.pop %v2135
    %v2137 = vmul.f32 %v2119, 1.442695
    %v2138 = vpow.pop %v2137
    %v2139 = vmul.f32 %v2120, 1.442695
    %v2140 = vpow.pop %v2139
    %v2141 = vmul.f32 %v2121, 1.442695
    %v2142 = vpow.pop %v2141
    %v2143 = vmul.f32 %v2122, 1.442695
    %v2144 = vpow.pop %v2143
    %v2145 = vmul.f32 %v2123, 1.442695
    %v2146 = vpow.pop %v2145
    %v2147 = vmul.f32 %v2124, 1.442695
    %v2148 = vpow.pop %v2147
    %v2149 = vmul.f32 %v2125, 1.442695
    %v2150 = vpow.pop %v2149
    %v2151 = vmul.f32 %v2126, 1.442695
    %v2152 = vpow.pop %v2151
    %v2153 = vmul.f32 %v2127, 1.442695
    %v2154 = vpow.pop %v2153
    %v2155 = vmul.f32 %v2128, 1.442695
    %v2156 = vpow.pop %v2155
    %v2157 = vadd.f32 %v2130, 1.0
    %v2158 = vadd.f32 %v2132, 1.0
    %v2159 = vadd.f32 %v2134, 1.0
    %v2160 = vadd.f32 %v2136, 1.0
    %v2161 = vadd.f32 %v2138, 1.0
    %v2162 = vadd.f32 %v2140, 1.0
    %v2163 = vadd.f32 %v2142, 1.0
    %v2164 = vadd.f32 %v2144, 1.0
    %v2165 = vadd.f32 %v2146, 1.0
    %v2166 = vadd.f32 %v2148, 1.0
    %v2167 = vadd.f32 %v2150, 1.0
    %v2168 = vadd.f32 %v2152, 1.0
    %v2169 = vadd.f32 %v2154, 1.0
    %v2170 = vadd.f32 %v2156, 1.0
    %v2171 = vrcp.pop %v2157
    %v2172 = vmul.f32 %v2157, %v2171
    %v2173 = vsub.f32 1.0, %v2172
    %v2174 = vmul.f32 %v2171, %v2173
    %v2175 = vadd.f32 %v2171, %v2174
    %vm2176 = vweird.f32 %v2157
    %vm2177 = vweird.f32 %v2171
    %vm2178 = vmor %vm2176, %vm2177
    %v2179 = vsel %vm2178, %v2171, %v2175
    %v2180 = vand.u32 2147483647, %v2157
    %vm2181 = vcmp.eq.f32.partialorder %v2180, 8.507059e+37
    %v2182 = vand.u32 %v2157, 2147483648
    %v2183 = vor.u32 1.1754944e-38, %v2182
    %v2184 = vsel %vm2181, %v2183, %v2179
    %v2185 = vmul.f32 1.0, %v2184
    %v2186 = vrcp.pop %v2158
    %v2187 = vmul.f32 %v2158, %v2186
    %v2188 = vsub.f32 1.0, %v2187
    %v2189 = vmul.f32 %v2186, %v2188
    %v2190 = vadd.f32 %v2186, %v2189
    %vm2191 = vweird.f32 %v2158
    %vm2192 = vweird.f32 %v2186
    %vm2193 = vmor %vm2191, %vm2192
    %v2194 = vsel %vm2193, %v2186, %v2190
    %v2195 = vand.u32 2147483647, %v2158
    %vm2196 = vcmp.eq.f32.partialorder %v2195, 8.507059e+37
    %v2197 = vand.u32 %v2158, 2147483648
    %v2198 = vor.u32 1.1754944e-38, %v2197
    %v2199 = vsel %vm2196, %v2198, %v2194
    %v2200 = vmul.f32 1.0, %v2199
    %v2201 = vrcp.pop %v2159
    %v2202 = vmul.f32 %v2159, %v2201
    %v2203 = vsub.f32 1.0, %v2202
    %v2204 = vmul.f32 %v2201, %v2203
    %v2205 = vadd.f32 %v2201, %v2204
    %vm2206 = vweird.f32 %v2159
    %vm2207 = vweird.f32 %v2201
    %vm2208 = vmor %vm2206, %vm2207
    %v2209 = vsel %vm2208, %v2201, %v2205
    %v2210 = vand.u32 2147483647, %v2159
    %vm2211 = vcmp.eq.f32.partialorder %v2210, 8.507059e+37
    %v2212 = vand.u32 %v2159, 2147483648
    %v2213 = vor.u32 1.1754944e-38, %v2212
    %v2214 = vsel %vm2211, %v2213, %v2209
    %v2215 = vmul.f32 1.0, %v2214
    %v2216 = vrcp.pop %v2160
    %v2217 = vmul.f32 %v2160, %v2216
    %v2218 = vsub.f32 1.0, %v2217
    %v2219 = vmul.f32 %v2216, %v2218
    %v2220 = vadd.f32 %v2216, %v2219
    %vm2221 = vweird.f32 %v2160
    %vm2222 = vweird.f32 %v2216
    %vm2223 = vmor %vm2221, %vm2222
    %v2224 = vsel %vm2223, %v2216, %v2220
    %v2225 = vand.u32 2147483647, %v2160
    %vm2226 = vcmp.eq.f32.partialorder %v2225, 8.507059e+37
    %v2227 = vand.u32 %v2160, 2147483648
    %v2228 = vor.u32 1.1754944e-38, %v2227
    %v2229 = vsel %vm2226, %v2228, %v2224
    %v2230 = vmul.f32 1.0, %v2229
    %v2231 = vrcp.pop %v2161
    %v2232 = vmul.f32 %v2161, %v2231
    %v2233 = vsub.f32 1.0, %v2232
    %v2234 = vmul.f32 %v2231, %v2233
    %v2235 = vadd.f32 %v2231, %v2234
    %vm2236 = vweird.f32 %v2161
    %vm2237 = vweird.f32 %v2231
    %vm2238 = vmor %vm2236, %vm2237
    %v2239 = vsel %vm2238, %v2231, %v2235
    %v2240 = vand.u32 2147483647, %v2161
    %vm2241 = vcmp.eq.f32.partialorder %v2240, 8.507059e+37
    %v2242 = vand.u32 %v2161, 2147483648
    %v2243 = vor.u32 1.1754944e-38, %v2242
    %v2244 = vsel %vm2241, %v2243, %v2239
    %v2245 = vmul.f32 1.0, %v2244
    %v2246 = vrcp.pop %v2162
    %v2247 = vmul.f32 %v2162, %v2246
    %v2248 = vsub.f32 1.0, %v2247
    %v2249 = vmul.f32 %v2246, %v2248
    %v2250 = vadd.f32 %v2246, %v2249
    %vm2251 = vweird.f32 %v2162
    %vm2252 = vweird.f32 %v2246
    %vm2253 = vmor %vm2251, %vm2252
    %v2254 = vsel %vm2253, %v2246, %v2250
    %v2255 = vand.u32 2147483647, %v2162
    %vm2256 = vcmp.eq.f32.partialorder %v2255, 8.507059e+37
    %v2257 = vand.u32 %v2162, 2147483648
    %v2258 = vor.u32 1.1754944e-38, %v2257
    %v2259 = vsel %vm2256, %v2258, %v2254
    %v2260 = vmul.f32 1.0, %v2259
    %v2261 = vrcp.pop %v2163
    %v2262 = vmul.f32 %v2163, %v2261
    %v2263 = vsub.f32 1.0, %v2262
    %v2264 = vmul.f32 %v2261, %v2263
    %v2265 = vadd.f32 %v2261, %v2264
    %vm2266 = vweird.f32 %v2163
    %vm2267 = vweird.f32 %v2261
    %vm2268 = vmor %vm2266, %vm2267
    %v2269 = vsel %vm2268, %v2261, %v2265
    %v2270 = vand.u32 2147483647, %v2163
    %vm2271 = vcmp.eq.f32.partialorder %v2270, 8.507059e+37
    %v2272 = vand.u32 %v2163, 2147483648
    %v2273 = vor.u32 1.1754944e-38, %v2272
    %v2274 = vsel %vm2271, %v2273, %v2269
    %v2275 = vmul.f32 1.0, %v2274
    %v2276 = vrcp.pop %v2164
    %v2277 = vmul.f32 %v2164, %v2276
    %v2278 = vsub.f32 1.0, %v2277
    %v2279 = vmul.f32 %v2276, %v2278
    %v2280 = vadd.f32 %v2276, %v2279
    %vm2281 = vweird.f32 %v2164
    %vm2282 = vweird.f32 %v2276
    %vm2283 = vmor %vm2281, %vm2282
    %v2284 = vsel %vm2283, %v2276, %v2280
    %v2285 = vand.u32 2147483647, %v2164
    %vm2286 = vcmp.eq.f32.partialorder %v2285, 8.507059e+37
    %v2287 = vand.u32 %v2164, 2147483648
    %v2288 = vor.u32 1.1754944e-38, %v2287
    %v2289 = vsel %vm2286, %v2288, %v2284
    %v2290 = vmul.f32 1.0, %v2289
    %v2291 = vrcp.pop %v2165
    %v2292 = vmul.f32 %v2165, %v2291
    %v2293 = vsub.f32 1.0, %v2292
    %v2294 = vmul.f32 %v2291, %v2293
    %v2295 = vadd.f32 %v2291, %v2294
    %vm2296 = vweird.f32 %v2165
    %vm2297 = vweird.f32 %v2291
    %vm2298 = vmor %vm2296, %vm2297
    %v2299 = vsel %vm2298, %v2291, %v2295
    %v2300 = vand.u32 2147483647, %v2165
    %vm2301 = vcmp.eq.f32.partialorder %v2300, 8.507059e+37
    %v2302 = vand.u32 %v2165, 2147483648
    %v2303 = vor.u32 1.1754944e-38, %v2302
    %v2304 = vsel %vm2301, %v2303, %v2299
    %v2305 = vmul.f32 1.0, %v2304
    %v2306 = vrcp.pop %v2166
    %v2307 = vmul.f32 %v2166, %v2306
    %v2308 = vsub.f32 1.0, %v2307
    %v2309 = vmul.f32 %v2306, %v2308
    %v2310 = vadd.f32 %v2306, %v2309
    %vm2311 = vweird.f32 %v2166
    %vm2312 = vweird.f32 %v2306
    %vm2313 = vmor %vm2311, %vm2312
    %v2314 = vsel %vm2313, %v2306, %v2310
    %v2315 = vand.u32 2147483647, %v2166
    %vm2316 = vcmp.eq.f32.partialorder %v2315, 8.507059e+37
    %v2317 = vand.u32 %v2166, 2147483648
    %v2318 = vor.u32 1.1754944e-38, %v2317
    %v2319 = vsel %vm2316, %v2318, %v2314
    %v2320 = vmul.f32 1.0, %v2319
    %v2321 = vrcp.pop %v2167
    %v2322 = vmul.f32 %v2167, %v2321
    %v2323 = vsub.f32 1.0, %v2322
    %v2324 = vmul.f32 %v2321, %v2323
    %v2325 = vadd.f32 %v2321, %v2324
    %vm2326 = vweird.f32 %v2167
    %vm2327 = vweird.f32 %v2321
    %vm2328 = vmor %vm2326, %vm2327
    %v2329 = vsel %vm2328, %v2321, %v2325
    %v2330 = vand.u32 2147483647, %v2167
    %vm2331 = vcmp.eq.f32.partialorder %v2330, 8.507059e+37
    %v2332 = vand.u32 %v2167, 2147483648
    %v2333 = vor.u32 1.1754944e-38, %v2332
    %v2334 = vsel %vm2331, %v2333, %v2329
    %v2335 = vmul.f32 1.0, %v2334
    %v2336 = vrcp.pop %v2168
    %v2337 = vmul.f32 %v2168, %v2336
    %v2338 = vsub.f32 1.0, %v2337
    %v2339 = vmul.f32 %v2336, %v2338
    %v2340 = vadd.f32 %v2336, %v2339
    %vm2341 = vweird.f32 %v2168
    %vm2342 = vweird.f32 %v2336
    %vm2343 = vmor %vm2341, %vm2342
    %v2344 = vsel %vm2343, %v2336, %v2340
    %v2345 = vand.u32 2147483647, %v2168
    %vm2346 = vcmp.eq.f32.partialorder %v2345, 8.507059e+37
    %v2347 = vand.u32 %v2168, 2147483648
    %v2348 = vor.u32 1.1754944e-38, %v2347
    %v2349 = vsel %vm2346, %v2348, %v2344
    %v2350 = vmul.f32 1.0, %v2349
    %v2351 = vrcp.pop %v2169
    %v2352 = vmul.f32 %v2169, %v2351
    %v2353 = vsub.f32 1.0, %v2352
    %v2354 = vmul.f32 %v2351, %v2353
    %v2355 = vadd.f32 %v2351, %v2354
    %vm2356 = vweird.f32 %v2169
    %vm2357 = vweird.f32 %v2351
    %vm2358 = vmor %vm2356, %vm2357
    %v2359 = vsel %vm2358, %v2351, %v2355
    %v2360 = vand.u32 2147483647, %v2169
    %vm2361 = vcmp.eq.f32.partialorder %v2360, 8.507059e+37
    %v2362 = vand.u32 %v2169, 2147483648
    %v2363 = vor.u32 1.1754944e-38, %v2362
    %v2364 = vsel %vm2361, %v2363, %v2359
    %v2365 = vmul.f32 1.0, %v2364
    %v2366 = vrcp.pop %v2170
    %v2367 = vmul.f32 %v2170, %v2366
    %v2368 = vsub.f32 1.0, %v2367
    %v2369 = vmul.f32 %v2366, %v2368
    %v2370 = vadd.f32 %v2366, %v2369
    %vm2371 = vweird.f32 %v2170
    %vm2372 = vweird.f32 %v2366
    %vm2373 = vmor %vm2371, %vm2372
    %v2374 = vsel %vm2373, %v2366, %v2370
    %v2375 = vand.u32 2147483647, %v2170
    %vm2376 = vcmp.eq.f32.partialorder %v2375, 8.507059e+37
    %v2377 = vand.u32 %v2170, 2147483648
    %v2378 = vor.u32 1.1754944e-38, %v2377
    %v2379 = vsel %vm2376, %v2378, %v2374
    %v2380 = vmul.f32 1.0, %v2379
    %2381 = vst [vmem:[#allocation2] sm:$0xff] %v2185
    %2382 = vst [vmem:[#allocation2 + $0x8] sm:$0xff] %v2200
    %2383 = vst [vmem:[#allocation2 + $0x10] sm:$0xff] %v2215
    %2384 = vst [vmem:[#allocation2 + $0x18] sm:$0xff] %v2230
    %2385 = vst [vmem:[#allocation2 + $0x20] sm:$0xff] %v2245
    %2386 = vst [vmem:[#allocation2 + $0x28] sm:$0xff] %v2260
    %vm2387 = vcmask 130048
    %2388 = vst.msk [vmem:[#allocation2 + $0x30] sm:$0xff] %vm2387, %v2275
    %2389 = vst [vmem:[#allocation2 + $0x38] sm:$0xff] %v2290
    %2390 = vst [vmem:[#allocation2 + $0x40] sm:$0xff] %v2305
    %2391 = vst [vmem:[#allocation2 + $0x48] sm:$0xff] %v2320
    %2392 = vst [vmem:[#allocation2 + $0x50] sm:$0xff] %v2335
    %2393 = vst [vmem:[#allocation2 + $0x58] sm:$0xff] %v2350
    %2394 = vst [vmem:[#allocation2 + $0x60] sm:$0xff] %v2365
    %2395 = vst.msk [vmem:[#allocation2 + $0x68] sm:$0xff] %vm2387, %v2380
    // Predicated region
    $region22: #{tpu_custom_call.1} parent=1 // pred_check
      _
    $region23: #{tpu_custom_call.1} parent=1 // pred_check_branch
      %2397 = sbr.rel (0) target = $region25
    $region24: #{tpu_custom_call.1} parent=1 // pred_region
      %2399 = vsyncadd [#allocation3], 0
      %s2400 = sshll.u32 [#allocation2], 4
      %s2401 = int_to_ptr.vmem [resolvable:$true] %s2400
      %s2402 = sshll.u32 %s5, 4
      %s2403 = int_to_ptr.hbm [resolvable:$true] %s2402
      %2408 = dma.vmem_to_hbm [thread:$0]  %s2401, 1792, %s2403, [#allocation3], 896, 896, 56
    $region25: #{tpu_custom_call.1} parent=1 // pred_fallthru
      _
    // Predicated region
    $region26: #{tpu_custom_call.1} parent=1 // pred_check
      _
    $region27: #{tpu_custom_call.1} parent=1 // pred_check_branch
      %2410 = sbr.rel (0) target = $region29
    $region28: #{tpu_custom_call.1} parent=1 // pred_region
      %2412 = dma.done [#allocation3], 1792
    $region29: #{tpu_custom_call.1} parent=1 // pred_fallthru
      _
    %2413 = vsyncpa [#allocation3], 1

</llo_original>
